<compile_context>
chip_gen: v7x
topology: tpu7x:2x2x1
jax: 0.10.0
libtpu: 0.0.40
codegen_flags: <defaults>
</compile_context>

<pallas_src>
import jax
import jax.numpy as jnp
import numpy as np
from jax import lax
from jax.experimental import pallas as pl
from jax.experimental.pallas import tpu as pltpu

THRESHOLD = 1.0
DECAY = 0.9

_LANE = 128
_SUBLANE = 8
_CHUNK = 8                 # timesteps per dense output store (sublane width)
_MAX_UNROLLED_CHUNKS = 4   # <= 32 timesteps fully unrolled; beyond -> fori_loop


def _round_up(n, m):
    return ((n + m - 1) // m) * m


def _pick_divisor(total, cap, quantum):
    """Largest multiple of `quantum` <= cap that divides `total` (fallback: total)."""
    best = None
    d = quantum
    cap = min(cap, total)
    while d <= cap:
        if total % d == 0:
            best = d
        d += quantum
    return total if best is None else best


def _surrogate(m):
    # sigmoid(10*(m - thr)) == 0.5*tanh(5*(m - thr)) + 0.5 : one EUP push on the
    # per-timestep critical chain instead of exp + reciprocal.
    return 0.5 * jnp.tanh(5.0 * (m - THRESHOLD)) + 0.5


def _snn_kernel(x_ref, w1_ref, b1_ref, w2_ref, b2_ref, out_ref,
                mem1_ref, mem2_ref):
    # Grid: (batch blocks [parallel], time blocks [arbitrary, sequential]).
    # NOTE: the membrane carry + reset below require the time axis to stay the
    # innermost, sequential ("arbitrary") grid axis.
    t_blk = pl.program_id(1)

    # reset(): membrane potentials start at zero at the first time block of
    # every batch block (scratch persists across the sequential time axis).
    @pl.when(t_blk == 0)
    def _():
        mem1_ref[...] = jnp.zeros_like(mem1_ref)
        mem2_ref[...] = jnp.zeros_like(mem2_ref)

    TB, TT, I = x_ref.shape            # batch block, time block, input size
    Hp = w1_ref.shape[1]               # padded hidden size (multiple of 128)
    Op = w2_ref.shape[1]               # padded output size (multiple of 128)

    w2 = w2_ref[...]
    # Hoisted broadcast: JAX does not CSE broadcast_in_dim, so doing this inside
    # the time loop re-emits it every step.
    b2b = jnp.broadcast_to(b2_ref[...], (TB, Op))

    ch = _CHUNK if TT % _CHUNK == 0 else TT
    n_chunks = TT // ch

    def run_chunk(h_chunk, m1, m2):
        # h_chunk: (TB, ch, Hp) f32 layer-1 pre-activations.
        outs = []
        for j in range(ch):
            # first IF neuron (f32 state / elementwise math)
            m1 = DECAY * m1 + h_chunk[:, j, :]
            s1 = _surrogate(m1)
            m1 = m1 * (1.0 - s1)
            # second fully connected layer (state-dependent -> stays in loop)
            # TODO(synk): hold W2 in the MXU across the loop via
            # pltpu.matmul_push_rhs / matmul_acc_lhs / matmul_pop once a bundle
            # dump confirms Mosaic re-pushes the RHS every timestep.
            o = jnp.dot(s1.astype(w2.dtype), w2,
                        preferred_element_type=jnp.float32) + b2b
            # second IF neuron
            m2 = DECAY * m2 + o
            s2 = _surrogate(m2)
            m2 = m2 * (1.0 - s2)
            outs.append(s2)
        # sublane-dense (TB, ch, Op) chunk, stored by the caller
        return jnp.stack(outs, axis=1).astype(out_ref.dtype), m1, m2

    m1 = mem1_ref[...]
    m2 = mem2_ref[...]

    if n_chunks <= _MAX_UNROLLED_CHUNKS:
        # Layer 1 is state-independent: one MXU call covering every
        # (batch, timestep) row of this block.  TT is a multiple of 8 (or == T),
        # so the leading-dim collapse is tile-aligned (no relayout copy).
        x_flat = x_ref[...].reshape(TB * TT, I)
        h_all = (jnp.dot(x_flat, w1_ref[...],
                         preferred_element_type=jnp.float32)
                 + b1_ref[...]).reshape(TB, TT, Hp)
        for c in range(n_chunks):
            out_c, m1, m2 = run_chunk(h_all[:, c * ch:(c + 1) * ch, :], m1, m2)
            # Dense 8-timestep store: bounds vreg live ranges and lets the
            # output writeback DMA start before the time block finishes.
            out_ref[:, c * ch:(c + 1) * ch, :] = out_c
    else:
        # Long time blocks (user override): per-chunk layer-1 matmul
        # (M = TB*8 rows, still MXU-filling at large TB) keeps the h temp
        # bounded; chunks iterated with fori_loop + pl.ds chunked stores.
        w1 = w1_ref[...]
        b1 = b1_ref[...]

        def body(c, carry):
            m1, m2 = carry
            t0 = pl.multiple_of(c * ch, ch)
            xc = x_ref[:, pl.ds(t0, ch), :]
            hc = (jnp.dot(xc.reshape(TB * ch, I), w1,
                          preferred_element_type=jnp.float32)
                  + b1).reshape(TB, ch, Hp)
            out_c, m1, m2 = run_chunk(hc, m1, m2)
            out_ref[:, pl.ds(t0, ch), :] = out_c
            return (m1, m2)

        m1, m2 = lax.fori_loop(0, n_chunks, body, (m1, m2))

    mem1_ref[...] = m1
    mem2_ref[...] = m2


def spiking_forward(x, w1, b1, w2, b2, *, time_block=None, batch_block=None,
                    compute_dtype=jnp.bfloat16, interpret=False):
    """x: [B, T, I] (PyTorch layout). w1: [H, I], w2: [O, H]. Returns [B, T, O].

    compute_dtype selects the MXU operand dtype (bf16 is the native MXU input on
    v5e/v6e/v7x); membrane state and all IF elementwise math stay in float32.
    """
    B, T, I = x.shape
    H = w1.shape[0]
    O = w2.shape[0]
    out_dtype = x.dtype

    # Pad feature dims to lane width and batch to sublane width so every vector
    # op / store is dense.  Padded W rows/cols and biases are zero, so padded
    # channels never influence real ones (padded-H spikes ~4.5e-5 only ever meet
    # zeroed W2 rows); padded outputs are sliced off at the end.
    Hp = _round_up(H, _LANE)
    Op = _round_up(O, _LANE)
    Bp = _round_up(B, _SUBLANE)

    # ---- block selection -----------------------------------------------------
    if batch_block is None:
        cap_b = 256                           # fill MXU M-width (v6e/v7x 256x256)
        if Bp >= 2 * 128:
            cap_b = min(cap_b, Bp // 2)       # >=2 blocks of >=128 rows (v7x 2 TCs)
        TB = _pick_divisor(Bp, cap_b, _SUBLANE)
    else:
        TB = batch_block
    assert Bp % TB == 0 and TB % _SUBLANE == 0, "bad batch_block"

    if time_block is None:
        TT = _pick_divisor(T, 32, _CHUNK)     # multiple of 8, <=32 -> >=2 blocks for long T
    else:
        TT = time_block
    assert T % TT == 0, "time_block must divide T"

    cd_size = jnp.dtype(compute_dtype).itemsize
    od_size = jnp.dtype(out_dtype).itemsize

    def est_vmem(tb, tt):
        return (2 * tb * tt * I * cd_size          # double-buffered x blocks
                + 2 * tb * tt * Op * od_size       # double-buffered out blocks
                + tb * tt * Hp * 4                 # h_all temp (f32)
                + (I * Hp + Hp * Op) * cd_size     # resident weights (single copy)
                + (Hp + Op) * 4                    # biases
                + tb * (Hp + Op) * 4)              # membrane scratch

    # Conservative budget: fits v7x's 64 MiB physical VMEM with headroom.
    vmem_budget = 40 * 1024 * 1024
    while time_block is None and est_vmem(TB, TT) > vmem_budget and TT > _CHUNK:
        new_tt = _pick_divisor(T, TT // 2, _CHUNK)
        if new_tt >= TT:
            break
        TT = new_tt
    while batch_block is None and est_vmem(TB, TT) > vmem_budget and TB > _SUBLANE:
        new_tb = _pick_divisor(Bp, TB // 2, _SUBLANE)
        if new_tb >= TB:
            break
        TB = new_tb

    # ---- parameter packing (transposed + zero-padded, MXU operand dtype) ------
    w1_t = jnp.zeros((I, Hp), compute_dtype).at[:, :H].set(
        jnp.transpose(w1).astype(compute_dtype))
    b1_p = jnp.zeros((1, Hp), jnp.float32).at[:, :H].set(b1.astype(jnp.float32))
    w2_t = jnp.zeros((Hp, Op), compute_dtype).at[:H, :O].set(
        jnp.transpose(w2).astype(compute_dtype))
    b2_p = jnp.zeros((1, Op), jnp.float32).at[:, :O].set(b2.astype(jnp.float32))

    x_p = x if Bp == B else jnp.pad(x, ((0, Bp - B), (0, 0), (0, 0)))
    x_p = x_p.astype(compute_dtype)

    grid = (Bp // TB, T // TT)

    est = est_vmem(TB, TT)
    cp_kwargs = dict(
        # batch blocks are independent (v7x can shard them across its two
        # TensorCores); time is a stateful recurrence -> sequential.
        dimension_semantics=("parallel", "arbitrary"),
    )
    if est > 16 * 1024 * 1024:   # past v5e's default scoped limit: be explicit
        cp_kwargs["vmem_limit_bytes"] = int(min(48 * 1024 * 1024,
                                                max(2 * est, 32 * 1024 * 1024)))

    # Loop-invariant operands: one resident VMEM copy, no double-buffering.
    resident = pl.BlockSpec(memory_space=pltpu.MemorySpace.VMEM)

    out = pl.pallas_call(
        _snn_kernel,
        out_shape=jax.ShapeDtypeStruct((Bp, T, Op), out_dtype),
        grid_spec=pltpu.PrefetchScalarGridSpec(
            num_scalar_prefetch=0,
            grid=grid,
            in_specs=[
                pl.BlockSpec((TB, TT, I), lambda b, t: (b, t, 0)),  # x block
                resident,                                           # W1^T
                resident,                                           # b1
                resident,                                           # W2^T
                resident,                                           # b2
            ],
            # TODO(synk): on v5e, if profiling shows output HBM writeback on the
            # roofline, make the out block's last dim the true O (lane-masked
            # stores) to cut the Op-padding write amplification.
            out_specs=pl.BlockSpec((TB, TT, Op), lambda b, t: (b, t, 0)),
            scratch_shapes=[
                pltpu.VMEM((TB, Hp), jnp.float32),   # membrane 1 (f32 state)
                pltpu.VMEM((TB, Op), jnp.float32),   # membrane 2 (f32 state)
            ],
        ),
        compiler_params=pltpu.CompilerParams(**cp_kwargs),
        interpret=interpret,
    )(x_p, w1_t, b1_p, w2_t, b2_p)

    return out[:B, :, :O]


def spiking_forward_ref(x, w1, b1, w2, b2, compute_dtype=jnp.float32):
    """Pure-JAX reference mirroring the PyTorch module (sigmoid surrogate)."""
    B, T, _ = x.shape
    H, O = w1.shape[0], w2.shape[0]
    w1_t = jnp.transpose(w1).astype(compute_dtype)
    w2_t = jnp.transpose(w2).astype(compute_dtype)
    m1 = jnp.zeros((B, H), jnp.float32)
    m2 = jnp.zeros((B, O), jnp.float32)
    outs = []
    for t in range(T):
        h = jnp.dot(x[:, t, :].astype(compute_dtype), w1_t,
                    preferred_element_type=jnp.float32) + b1
        m1 = DECAY * m1 + h
        s1 = jax.nn.sigmoid(10.0 * (m1 - THRESHOLD))
        m1 = m1 * (1.0 - s1)
        o = jnp.dot(s1.astype(compute_dtype), w2_t,
                    preferred_element_type=jnp.float32) + b2
        m2 = DECAY * m2 + o
        s2 = jax.nn.sigmoid(10.0 * (m2 - THRESHOLD))
        m2 = m2 * (1.0 - s2)
        outs.append(s2)
    return jnp.stack(outs, axis=1)


if __name__ == "__main__":
    # x: [batch, time_window, input_size] — small demo shapes.
    B, T, I, H, O = 2, 8, 32, 32, 10

    key = jax.random.PRNGKey(0)
    kx, kw1, kb1, kw2, kb2 = jax.random.split(key, 5)

    x = jax.random.normal(kx, (B, T, I), dtype=jnp.float32)
    # deterministic nn.Linear-style params (synthetic, not a checkpoint)
    w1 = jax.random.uniform(kw1, (H, I), jnp.float32, -1.0, 1.0) / np.sqrt(I)
    b1 = jax.random.uniform(kb1, (H,), jnp.float32, -1.0, 1.0) / np.sqrt(I)
    w2 = jax.random.uniform(kw2, (O, H), jnp.float32, -1.0, 1.0) / np.sqrt(H)
    b2 = jax.random.uniform(kb2, (O,), jnp.float32, -1.0, 1.0) / np.sqrt(H)

    # f32 MXU path: tight check against the pure-JAX reference (the tanh-form
    # surrogate is mathematically identical to sigmoid(10*(m - thr))).
    out_f32 = jax.block_until_ready(
        spiking_forward(x, w1, b1, w2, b2, compute_dtype=jnp.float32))
    ref_f32 = jax.block_until_ready(spiking_forward_ref(x, w1, b1, w2, b2))
    assert out_f32.shape == (B, T, O), out_f32.shape
    np.testing.assert_allclose(np.asarray(out_f32), np.asarray(ref_f32),
                               rtol=2e-3, atol=2e-4)

    # Default path (bf16 MXU operands, f32 IF math): tolerance check against a
    # reference that casts the matmul operands the same way, plus range checks.
    out_bf = jax.block_until_ready(spiking_forward(x, w1, b1, w2, b2))
    ref_bf = jax.block_until_ready(
        spiking_forward_ref(x, w1, b1, w2, b2, compute_dtype=jnp.bfloat16))
    assert out_bf.shape == (B, T, O), out_bf.shape
    np.testing.assert_allclose(np.asarray(out_bf), np.asarray(ref_bf),
                               rtol=5e-2, atol=2e-2)
    assert bool(jnp.all(jnp.isfinite(out_bf)))
    assert bool(jnp.all((out_bf >= 0.0) & (out_bf <= 1.0)))

    print("KERNEL_OK")
</pallas_src>

<mosaic_0001>
module attributes {stable_mosaic.version = 11 : i64} {
  func.func @_snn_kernel(%arg0: i32, %arg1: i32, %arg2: memref<8x8x32xf32, #tpu.memory_space<vmem>>, %arg3: memref<32x128xf32, #tpu.memory_space<vmem>>, %arg4: memref<1x128xf32, #tpu.memory_space<vmem>>, %arg5: memref<128x128xf32, #tpu.memory_space<vmem>>, %arg6: memref<1x128xf32, #tpu.memory_space<vmem>>, %arg7: memref<8x8x128xf32, #tpu.memory_space<vmem>>, %arg8: memref<8x128xf32, #tpu.memory_space<vmem>>, %arg9: memref<8x128xf32, #tpu.memory_space<vmem>>) attributes {dimension_semantics = [#tpu.dimension_semantics<parallel>, #tpu.dimension_semantics<arbitrary>], iteration_bounds = array<i64: 1, 1>, scalar_prefetch = 0 : i64, scratch_operands = 2 : i64, tpu.core_type = #tpu.core_type<tc>, window_params = [{transform_indices = @transform_0, window_bounds = array<i64: 8, 8, 32>}, {pipeline_mode = #tpu.pipeline_mode<synchronous>, transform_indices = @transform_1, window_bounds = array<i64: 32, 128>}, {pipeline_mode = #tpu.pipeline_mode<synchronous>, transform_indices = @transform_2, window_bounds = array<i64: 1, 128>}, {pipeline_mode = #tpu.pipeline_mode<synchronous>, transform_indices = @transform_3, window_bounds = array<i64: 128, 128>}, {pipeline_mode = #tpu.pipeline_mode<synchronous>, transform_indices = @transform_4, window_bounds = array<i64: 1, 128>}, {transform_indices = @transform_5, window_bounds = array<i64: 8, 8, 128>}]} {
    %c0_i32 = arith.constant 0 : i32
    %0 = arith.cmpi eq, %arg1, %c0_i32 : i32
    %1 = arith.extui %0 : i1 to i32
    %c0_i32_0 = arith.constant 0 : i32
    %2 = arith.cmpi ne, %1, %c0_i32_0 : i32
    scf.if %2 {
      %cst_126 = arith.constant 0.000000e+00 : f32
      %301 = vector.broadcast %cst_126 : f32 to vector<8x128xf32>
      %c0_127 = arith.constant 0 : index
      %c0_128 = arith.constant 0 : index
      %302 = vector.load %arg8[%c0_127, %c0_128] : memref<8x128xf32, #tpu.memory_space<vmem>>, vector<8x128xf32>
      tpu.vector_store %arg8[%c0_127, %c0_128], %301 {strides = array<i32>} : memref<8x128xf32, #tpu.memory_space<vmem>>, vector<8x128xf32>,
      %cst_129 = arith.constant 0.000000e+00 : f32
      %303 = vector.broadcast %cst_129 : f32 to vector<8x128xf32>
      %c0_130 = arith.constant 0 : index
      %c0_131 = arith.constant 0 : index
      %304 = vector.load %arg9[%c0_130, %c0_131] : memref<8x128xf32, #tpu.memory_space<vmem>>, vector<8x128xf32>
      tpu.vector_store %arg9[%c0_130, %c0_131], %303 {strides = array<i32>} : memref<8x128xf32, #tpu.memory_space<vmem>>, vector<8x128xf32>,
    } else {
    }
    %c0 = arith.constant 0 : index
    %c0_1 = arith.constant 0 : index
    %3 = vector.load %arg5[%c0, %c0_1] : memref<128x128xf32, #tpu.memory_space<vmem>>, vector<128x128xf32>
    %c0_2 = arith.constant 0 : index
    %c0_3 = arith.constant 0 : index
    %4 = vector.load %arg6[%c0_2, %c0_3] : memref<1x128xf32, #tpu.memory_space<vmem>>, vector<1x128xf32>
    %5 = vector.shape_cast %4 : vector<1x128xf32> to vector<1x128xf32>
    %6 = vector.broadcast %5 : vector<1x128xf32> to vector<8x128xf32>
    %c0_4 = arith.constant 0 : index
    %c0_5 = arith.constant 0 : index
    %7 = vector.load %arg8[%c0_4, %c0_5] : memref<8x128xf32, #tpu.memory_space<vmem>>, vector<8x128xf32>
    %c0_6 = arith.constant 0 : index
    %c0_7 = arith.constant 0 : index
    %8 = vector.load %arg9[%c0_6, %c0_7] : memref<8x128xf32, #tpu.memory_space<vmem>>, vector<8x128xf32>
    %c0_8 = arith.constant 0 : index
    %c0_9 = arith.constant 0 : index
    %c0_10 = arith.constant 0 : index
    %9 = vector.load %arg2[%c0_8, %c0_9, %c0_10] : memref<8x8x32xf32, #tpu.memory_space<vmem>>, vector<8x8x32xf32>
    %10 = vector.shape_cast %9 : vector<8x8x32xf32> to vector<64x32xf32>
    %c0_11 = arith.constant 0 : index
    %c0_12 = arith.constant 0 : index
    %11 = vector.load %arg3[%c0_11, %c0_12] : memref<32x128xf32, #tpu.memory_space<vmem>>, vector<32x128xf32>
    %cst = arith.constant dense<0.000000e+00> : vector<64x128xf32>
    %12 = tpu.matmul %10, %11, %cst {dimension_numbers = #tpu.dot_dimension_numbers<[1], [0], [0], [1], [0, 0, 1, 1], [], []>} : vector<64x32xf32>, vector<32x128xf32>, vector<64x128xf32> -> vector<64x128xf32>
    %c0_13 = arith.constant 0 : index
    %c0_14 = arith.constant 0 : index
    %13 = vector.load %arg4[%c0_13, %c0_14] : memref<1x128xf32, #tpu.memory_space<vmem>>, vector<1x128xf32>
    %14 = vector.broadcast %13 : vector<1x128xf32> to vector<64x128xf32>
    %15 = arith.addf %12, %14 : vector<64x128xf32>
    %16 = vector.shape_cast %15 : vector<64x128xf32> to vector<8x8x128xf32>
    %cst_15 = arith.constant 0.899999976 : f32
    %17 = vector.broadcast %cst_15 : f32 to vector<8x128xf32>
    %18 = arith.mulf %17, %7 : vector<8x128xf32>
    %19 = vector.extract_strided_slice %16 {offsets = [0, 0, 0], sizes = [8, 1, 128], strides = [1, 1, 1]} : vector<8x8x128xf32> to vector<8x1x128xf32>
    %20 = vector.shape_cast %19 : vector<8x1x128xf32> to vector<8x128xf32>
    %21 = arith.addf %18, %20 : vector<8x128xf32>
    %cst_16 = arith.constant 1.000000e+00 : f32
    %22 = vector.broadcast %cst_16 : f32 to vector<8x128xf32>
    %23 = arith.subf %21, %22 : vector<8x128xf32>
    %cst_17 = arith.constant 5.000000e+00 : f32
    %24 = vector.broadcast %cst_17 : f32 to vector<8x128xf32>
    %25 = arith.mulf %24, %23 : vector<8x128xf32>
    %26 = math.tanh %25 : vector<8x128xf32>
    %cst_18 = arith.constant 5.000000e-01 : f32
    %27 = vector.broadcast %cst_18 : f32 to vector<8x128xf32>
    %28 = arith.mulf %27, %26 : vector<8x128xf32>
    %cst_19 = arith.constant 5.000000e-01 : f32
    %29 = vector.broadcast %cst_19 : f32 to vector<8x128xf32>
    %30 = arith.addf %28, %29 : vector<8x128xf32>
    %cst_20 = arith.constant 1.000000e+00 : f32
    %31 = vector.broadcast %cst_20 : f32 to vector<8x128xf32>
    %32 = arith.subf %31, %30 : vector<8x128xf32>
    %33 = arith.mulf %21, %32 : vector<8x128xf32>
    %cst_21 = arith.constant dense<0.000000e+00> : vector<8x128xf32>
    %34 = tpu.matmul %30, %3, %cst_21 {dimension_numbers = #tpu.dot_dimension_numbers<[1], [0], [0], [1], [0, 0, 1, 1], [], []>} : vector<8x128xf32>, vector<128x128xf32>, vector<8x128xf32> -> vector<8x128xf32>
    %35 = arith.addf %34, %6 : vector<8x128xf32>
    %cst_22 = arith.constant 0.899999976 : f32
    %36 = vector.broadcast %cst_22 : f32 to vector<8x128xf32>
    %37 = arith.mulf %36, %8 : vector<8x128xf32>
    %38 = arith.addf %37, %35 : vector<8x128xf32>
    %cst_23 = arith.constant 1.000000e+00 : f32
    %39 = vector.broadcast %cst_23 : f32 to vector<8x128xf32>
    %40 = arith.subf %38, %39 : vector<8x128xf32>
    %cst_24 = arith.constant 5.000000e+00 : f32
    %41 = vector.broadcast %cst_24 : f32 to vector<8x128xf32>
    %42 = arith.mulf %41, %40 : vector<8x128xf32>
    %43 = math.tanh %42 : vector<8x128xf32>
    %cst_25 = arith.constant 5.000000e-01 : f32
    %44 = vector.broadcast %cst_25 : f32 to vector<8x128xf32>
    %45 = arith.mulf %44, %43 : vector<8x128xf32>
    %cst_26 = arith.constant 5.000000e-01 : f32
    %46 = vector.broadcast %cst_26 : f32 to vector<8x128xf32>
    %47 = arith.addf %45, %46 : vector<8x128xf32>
    %cst_27 = arith.constant 1.000000e+00 : f32
    %48 = vector.broadcast %cst_27 : f32 to vector<8x128xf32>
    %49 = arith.subf %48, %47 : vector<8x128xf32>
    %50 = arith.mulf %38, %49 : vector<8x128xf32>
    %cst_28 = arith.constant 0.899999976 : f32
    %51 = vector.broadcast %cst_28 : f32 to vector<8x128xf32>
    %52 = arith.mulf %51, %33 : vector<8x128xf32>
    %53 = vector.extract_strided_slice %16 {offsets = [0, 1, 0], sizes = [8, 1, 128], strides = [1, 1, 1]} : vector<8x8x128xf32> to vector<8x1x128xf32>
    %54 = vector.shape_cast %53 : vector<8x1x128xf32> to vector<8x128xf32>
    %55 = arith.addf %52, %54 : vector<8x128xf32>
    %cst_29 = arith.constant 1.000000e+00 : f32
    %56 = vector.broadcast %cst_29 : f32 to vector<8x128xf32>
    %57 = arith.subf %55, %56 : vector<8x128xf32>
    %cst_30 = arith.constant 5.000000e+00 : f32
    %58 = vector.broadcast %cst_30 : f32 to vector<8x128xf32>
    %59 = arith.mulf %58, %57 : vector<8x128xf32>
    %60 = math.tanh %59 : vector<8x128xf32>
    %cst_31 = arith.constant 5.000000e-01 : f32
    %61 = vector.broadcast %cst_31 : f32 to vector<8x128xf32>
    %62 = arith.mulf %61, %60 : vector<8x128xf32>
    %cst_32 = arith.constant 5.000000e-01 : f32
    %63 = vector.broadcast %cst_32 : f32 to vector<8x128xf32>
    %64 = arith.addf %62, %63 : vector<8x128xf32>
    %cst_33 = arith.constant 1.000000e+00 : f32
    %65 = vector.broadcast %cst_33 : f32 to vector<8x128xf32>
    %66 = arith.subf %65, %64 : vector<8x128xf32>
    %67 = arith.mulf %55, %66 : vector<8x128xf32>
    %cst_34 = arith.constant dense<0.000000e+00> : vector<8x128xf32>
    %68 = tpu.matmul %64, %3, %cst_34 {dimension_numbers = #tpu.dot_dimension_numbers<[1], [0], [0], [1], [0, 0, 1, 1], [], []>} : vector<8x128xf32>, vector<128x128xf32>, vector<8x128xf32> -> vector<8x128xf32>
    %69 = arith.addf %68, %6 : vector<8x128xf32>
    %cst_35 = arith.constant 0.899999976 : f32
    %70 = vector.broadcast %cst_35 : f32 to vector<8x128xf32>
    %71 = arith.mulf %70, %50 : vector<8x128xf32>
    %72 = arith.addf %71, %69 : vector<8x128xf32>
    %cst_36 = arith.constant 1.000000e+00 : f32
    %73 = vector.broadcast %cst_36 : f32 to vector<8x128xf32>
    %74 = arith.subf %72, %73 : vector<8x128xf32>
    %cst_37 = arith.constant 5.000000e+00 : f32
    %75 = vector.broadcast %cst_37 : f32 to vector<8x128xf32>
    %76 = arith.mulf %75, %74 : vector<8x128xf32>
    %77 = math.tanh %76 : vector<8x128xf32>
    %cst_38 = arith.constant 5.000000e-01 : f32
    %78 = vector.broadcast %cst_38 : f32 to vector<8x128xf32>
    %79 = arith.mulf %78, %77 : vector<8x128xf32>
    %cst_39 = arith.constant 5.000000e-01 : f32
    %80 = vector.broadcast %cst_39 : f32 to vector<8x128xf32>
    %81 = arith.addf %79, %80 : vector<8x128xf32>
    %cst_40 = arith.constant 1.000000e+00 : f32
    %82 = vector.broadcast %cst_40 : f32 to vector<8x128xf32>
    %83 = arith.subf %82, %81 : vector<8x128xf32>
    %84 = arith.mulf %72, %83 : vector<8x128xf32>
    %cst_41 = arith.constant 0.899999976 : f32
    %85 = vector.broadcast %cst_41 : f32 to vector<8x128xf32>
    %86 = arith.mulf %85, %67 : vector<8x128xf32>
    %87 = vector.extract_strided_slice %16 {offsets = [0, 2, 0], sizes = [8, 1, 128], strides = [1, 1, 1]} : vector<8x8x128xf32> to vector<8x1x128xf32>
    %88 = vector.shape_cast %87 : vector<8x1x128xf32> to vector<8x128xf32>
    %89 = arith.addf %86, %88 : vector<8x128xf32>
    %cst_42 = arith.constant 1.000000e+00 : f32
    %90 = vector.broadcast %cst_42 : f32 to vector<8x128xf32>
    %91 = arith.subf %89, %90 : vector<8x128xf32>
    %cst_43 = arith.constant 5.000000e+00 : f32
    %92 = vector.broadcast %cst_43 : f32 to vector<8x128xf32>
    %93 = arith.mulf %92, %91 : vector<8x128xf32>
    %94 = math.tanh %93 : vector<8x128xf32>
    %cst_44 = arith.constant 5.000000e-01 : f32
    %95 = vector.broadcast %cst_44 : f32 to vector<8x128xf32>
    %96 = arith.mulf %95, %94 : vector<8x128xf32>
    %cst_45 = arith.constant 5.000000e-01 : f32
    %97 = vector.broadcast %cst_45 : f32 to vector<8x128xf32>
    %98 = arith.addf %96, %97 : vector<8x128xf32>
    %cst_46 = arith.constant 1.000000e+00 : f32
    %99 = vector.broadcast %cst_46 : f32 to vector<8x128xf32>
    %100 = arith.subf %99, %98 : vector<8x128xf32>
    %101 = arith.mulf %89, %100 : vector<8x128xf32>
    %cst_47 = arith.constant dense<0.000000e+00> : vector<8x128xf32>
    %102 = tpu.matmul %98, %3, %cst_47 {dimension_numbers = #tpu.dot_dimension_numbers<[1], [0], [0], [1], [0, 0, 1, 1], [], []>} : vector<8x128xf32>, vector<128x128xf32>, vector<8x128xf32> -> vector<8x128xf32>
    %103 = arith.addf %102, %6 : vector<8x128xf32>
    %cst_48 = arith.constant 0.899999976 : f32
    %104 = vector.broadcast %cst_48 : f32 to vector<8x128xf32>
    %105 = arith.mulf %104, %84 : vector<8x128xf32>
    %106 = arith.addf %105, %103 : vector<8x128xf32>
    %cst_49 = arith.constant 1.000000e+00 : f32
    %107 = vector.broadcast %cst_49 : f32 to vector<8x128xf32>
    %108 = arith.subf %106, %107 : vector<8x128xf32>
    %cst_50 = arith.constant 5.000000e+00 : f32
    %109 = vector.broadcast %cst_50 : f32 to vector<8x128xf32>
    %110 = arith.mulf %109, %108 : vector<8x128xf32>
    %111 = math.tanh %110 : vector<8x128xf32>
    %cst_51 = arith.constant 5.000000e-01 : f32
    %112 = vector.broadcast %cst_51 : f32 to vector<8x128xf32>
    %113 = arith.mulf %112, %111 : vector<8x128xf32>
    %cst_52 = arith.constant 5.000000e-01 : f32
    %114 = vector.broadcast %cst_52 : f32 to vector<8x128xf32>
    %115 = arith.addf %113, %114 : vector<8x128xf32>
    %cst_53 = arith.constant 1.000000e+00 : f32
    %116 = vector.broadcast %cst_53 : f32 to vector<8x128xf32>
    %117 = arith.subf %116, %115 : vector<8x128xf32>
    %118 = arith.mulf %106, %117 : vector<8x128xf32>
    %cst_54 = arith.constant 0.899999976 : f32
    %119 = vector.broadcast %cst_54 : f32 to vector<8x128xf32>
    %120 = arith.mulf %119, %101 : vector<8x128xf32>
    %121 = vector.extract_strided_slice %16 {offsets = [0, 3, 0], sizes = [8, 1, 128], strides = [1, 1, 1]} : vector<8x8x128xf32> to vector<8x1x128xf32>
    %122 = vector.shape_cast %121 : vector<8x1x128xf32> to vector<8x128xf32>
    %123 = arith.addf %120, %122 : vector<8x128xf32>
    %cst_55 = arith.constant 1.000000e+00 : f32
    %124 = vector.broadcast %cst_55 : f32 to vector<8x128xf32>
    %125 = arith.subf %123, %124 : vector<8x128xf32>
    %cst_56 = arith.constant 5.000000e+00 : f32
    %126 = vector.broadcast %cst_56 : f32 to vector<8x128xf32>
    %127 = arith.mulf %126, %125 : vector<8x128xf32>
    %128 = math.tanh %127 : vector<8x128xf32>
    %cst_57 = arith.constant 5.000000e-01 : f32
    %129 = vector.broadcast %cst_57 : f32 to vector<8x128xf32>
    %130 = arith.mulf %129, %128 : vector<8x128xf32>
    %cst_58 = arith.constant 5.000000e-01 : f32
    %131 = vector.broadcast %cst_58 : f32 to vector<8x128xf32>
    %132 = arith.addf %130, %131 : vector<8x128xf32>
    %cst_59 = arith.constant 1.000000e+00 : f32
    %133 = vector.broadcast %cst_59 : f32 to vector<8x128xf32>
    %134 = arith.subf %133, %132 : vector<8x128xf32>
    %135 = arith.mulf %123, %134 : vector<8x128xf32>
    %cst_60 = arith.constant dense<0.000000e+00> : vector<8x128xf32>
    %136 = tpu.matmul %132, %3, %cst_60 {dimension_numbers = #tpu.dot_dimension_numbers<[1], [0], [0], [1], [0, 0, 1, 1], [], []>} : vector<8x128xf32>, vector<128x128xf32>, vector<8x128xf32> -> vector<8x128xf32>
    %137 = arith.addf %136, %6 : vector<8x128xf32>
    %cst_61 = arith.constant 0.899999976 : f32
    %138 = vector.broadcast %cst_61 : f32 to vector<8x128xf32>
    %139 = arith.mulf %138, %118 : vector<8x128xf32>
    %140 = arith.addf %139, %137 : vector<8x128xf32>
    %cst_62 = arith.constant 1.000000e+00 : f32
    %141 = vector.broadcast %cst_62 : f32 to vector<8x128xf32>
    %142 = arith.subf %140, %141 : vector<8x128xf32>
    %cst_63 = arith.constant 5.000000e+00 : f32
    %143 = vector.broadcast %cst_63 : f32 to vector<8x128xf32>
    %144 = arith.mulf %143, %142 : vector<8x128xf32>
    %145 = math.tanh %144 : vector<8x128xf32>
    %cst_64 = arith.constant 5.000000e-01 : f32
    %146 = vector.broadcast %cst_64 : f32 to vector<8x128xf32>
    %147 = arith.mulf %146, %145 : vector<8x128xf32>
    %cst_65 = arith.constant 5.000000e-01 : f32
    %148 = vector.broadcast %cst_65 : f32 to vector<8x128xf32>
    %149 = arith.addf %147, %148 : vector<8x128xf32>
    %cst_66 = arith.constant 1.000000e+00 : f32
    %150 = vector.broadcast %cst_66 : f32 to vector<8x128xf32>
    %151 = arith.subf %150, %149 : vector<8x128xf32>
    %152 = arith.mulf %140, %151 : vector<8x128xf32>
    %cst_67 = arith.constant 0.899999976 : f32
    %153 = vector.broadcast %cst_67 : f32 to vector<8x128xf32>
    %154 = arith.mulf %153, %135 : vector<8x128xf32>
    %155 = vector.extract_strided_slice %16 {offsets = [0, 4, 0], sizes = [8, 1, 128], strides = [1, 1, 1]} : vector<8x8x128xf32> to vector<8x1x128xf32>
    %156 = vector.shape_cast %155 : vector<8x1x128xf32> to vector<8x128xf32>
    %157 = arith.addf %154, %156 : vector<8x128xf32>
    %cst_68 = arith.constant 1.000000e+00 : f32
    %158 = vector.broadcast %cst_68 : f32 to vector<8x128xf32>
    %159 = arith.subf %157, %158 : vector<8x128xf32>
    %cst_69 = arith.constant 5.000000e+00 : f32
    %160 = vector.broadcast %cst_69 : f32 to vector<8x128xf32>
    %161 = arith.mulf %160, %159 : vector<8x128xf32>
    %162 = math.tanh %161 : vector<8x128xf32>
    %cst_70 = arith.constant 5.000000e-01 : f32
    %163 = vector.broadcast %cst_70 : f32 to vector<8x128xf32>
    %164 = arith.mulf %163, %162 : vector<8x128xf32>
    %cst_71 = arith.constant 5.000000e-01 : f32
    %165 = vector.broadcast %cst_71 : f32 to vector<8x128xf32>
    %166 = arith.addf %164, %165 : vector<8x128xf32>
    %cst_72 = arith.constant 1.000000e+00 : f32
    %167 = vector.broadcast %cst_72 : f32 to vector<8x128xf32>
    %168 = arith.subf %167, %166 : vector<8x128xf32>
    %169 = arith.mulf %157, %168 : vector<8x128xf32>
    %cst_73 = arith.constant dense<0.000000e+00> : vector<8x128xf32>
    %170 = tpu.matmul %166, %3, %cst_73 {dimension_numbers = #tpu.dot_dimension_numbers<[1], [0], [0], [1], [0, 0, 1, 1], [], []>} : vector<8x128xf32>, vector<128x128xf32>, vector<8x128xf32> -> vector<8x128xf32>
    %171 = arith.addf %170, %6 : vector<8x128xf32>
    %cst_74 = arith.constant 0.899999976 : f32
    %172 = vector.broadcast %cst_74 : f32 to vector<8x128xf32>
    %173 = arith.mulf %172, %152 : vector<8x128xf32>
    %174 = arith.addf %173, %171 : vector<8x128xf32>
    %cst_75 = arith.constant 1.000000e+00 : f32
    %175 = vector.broadcast %cst_75 : f32 to vector<8x128xf32>
    %176 = arith.subf %174, %175 : vector<8x128xf32>
    %cst_76 = arith.constant 5.000000e+00 : f32
    %177 = vector.broadcast %cst_76 : f32 to vector<8x128xf32>
    %178 = arith.mulf %177, %176 : vector<8x128xf32>
    %179 = math.tanh %178 : vector<8x128xf32>
    %cst_77 = arith.constant 5.000000e-01 : f32
    %180 = vector.broadcast %cst_77 : f32 to vector<8x128xf32>
    %181 = arith.mulf %180, %179 : vector<8x128xf32>
    %cst_78 = arith.constant 5.000000e-01 : f32
    %182 = vector.broadcast %cst_78 : f32 to vector<8x128xf32>
    %183 = arith.addf %181, %182 : vector<8x128xf32>
    %cst_79 = arith.constant 1.000000e+00 : f32
    %184 = vector.broadcast %cst_79 : f32 to vector<8x128xf32>
    %185 = arith.subf %184, %183 : vector<8x128xf32>
    %186 = arith.mulf %174, %185 : vector<8x128xf32>
    %cst_80 = arith.constant 0.899999976 : f32
    %187 = vector.broadcast %cst_80 : f32 to vector<8x128xf32>
    %188 = arith.mulf %187, %169 : vector<8x128xf32>
    %189 = vector.extract_strided_slice %16 {offsets = [0, 5, 0], sizes = [8, 1, 128], strides = [1, 1, 1]} : vector<8x8x128xf32> to vector<8x1x128xf32>
    %190 = vector.shape_cast %189 : vector<8x1x128xf32> to vector<8x128xf32>
    %191 = arith.addf %188, %190 : vector<8x128xf32>
    %cst_81 = arith.constant 1.000000e+00 : f32
    %192 = vector.broadcast %cst_81 : f32 to vector<8x128xf32>
    %193 = arith.subf %191, %192 : vector<8x128xf32>
    %cst_82 = arith.constant 5.000000e+00 : f32
    %194 = vector.broadcast %cst_82 : f32 to vector<8x128xf32>
    %195 = arith.mulf %194, %193 : vector<8x128xf32>
    %196 = math.tanh %195 : vector<8x128xf32>
    %cst_83 = arith.constant 5.000000e-01 : f32
    %197 = vector.broadcast %cst_83 : f32 to vector<8x128xf32>
    %198 = arith.mulf %197, %196 : vector<8x128xf32>
    %cst_84 = arith.constant 5.000000e-01 : f32
    %199 = vector.broadcast %cst_84 : f32 to vector<8x128xf32>
    %200 = arith.addf %198, %199 : vector<8x128xf32>
    %cst_85 = arith.constant 1.000000e+00 : f32
    %201 = vector.broadcast %cst_85 : f32 to vector<8x128xf32>
    %202 = arith.subf %201, %200 : vector<8x128xf32>
    %203 = arith.mulf %191, %202 : vector<8x128xf32>
    %cst_86 = arith.constant dense<0.000000e+00> : vector<8x128xf32>
    %204 = tpu.matmul %200, %3, %cst_86 {dimension_numbers = #tpu.dot_dimension_numbers<[1], [0], [0], [1], [0, 0, 1, 1], [], []>} : vector<8x128xf32>, vector<128x128xf32>, vector<8x128xf32> -> vector<8x128xf32>
    %205 = arith.addf %204, %6 : vector<8x128xf32>
    %cst_87 = arith.constant 0.899999976 : f32
    %206 = vector.broadcast %cst_87 : f32 to vector<8x128xf32>
    %207 = arith.mulf %206, %186 : vector<8x128xf32>
    %208 = arith.addf %207, %205 : vector<8x128xf32>
    %cst_88 = arith.constant 1.000000e+00 : f32
    %209 = vector.broadcast %cst_88 : f32 to vector<8x128xf32>
    %210 = arith.subf %208, %209 : vector<8x128xf32>
    %cst_89 = arith.constant 5.000000e+00 : f32
    %211 = vector.broadcast %cst_89 : f32 to vector<8x128xf32>
    %212 = arith.mulf %211, %210 : vector<8x128xf32>
    %213 = math.tanh %212 : vector<8x128xf32>
    %cst_90 = arith.constant 5.000000e-01 : f32
    %214 = vector.broadcast %cst_90 : f32 to vector<8x128xf32>
    %215 = arith.mulf %214, %213 : vector<8x128xf32>
    %cst_91 = arith.constant 5.000000e-01 : f32
    %216 = vector.broadcast %cst_91 : f32 to vector<8x128xf32>
    %217 = arith.addf %215, %216 : vector<8x128xf32>
    %cst_92 = arith.constant 1.000000e+00 : f32
    %218 = vector.broadcast %cst_92 : f32 to vector<8x128xf32>
    %219 = arith.subf %218, %217 : vector<8x128xf32>
    %220 = arith.mulf %208, %219 : vector<8x128xf32>
    %cst_93 = arith.constant 0.899999976 : f32
    %221 = vector.broadcast %cst_93 : f32 to vector<8x128xf32>
    %222 = arith.mulf %221, %203 : vector<8x128xf32>
    %223 = vector.extract_strided_slice %16 {offsets = [0, 6, 0], sizes = [8, 1, 128], strides = [1, 1, 1]} : vector<8x8x128xf32> to vector<8x1x128xf32>
    %224 = vector.shape_cast %223 : vector<8x1x128xf32> to vector<8x128xf32>
    %225 = arith.addf %222, %224 : vector<8x128xf32>
    %cst_94 = arith.constant 1.000000e+00 : f32
    %226 = vector.broadcast %cst_94 : f32 to vector<8x128xf32>
    %227 = arith.subf %225, %226 : vector<8x128xf32>
    %cst_95 = arith.constant 5.000000e+00 : f32
    %228 = vector.broadcast %cst_95 : f32 to vector<8x128xf32>
    %229 = arith.mulf %228, %227 : vector<8x128xf32>
    %230 = math.tanh %229 : vector<8x128xf32>
    %cst_96 = arith.constant 5.000000e-01 : f32
    %231 = vector.broadcast %cst_96 : f32 to vector<8x128xf32>
    %232 = arith.mulf %231, %230 : vector<8x128xf32>
    %cst_97 = arith.constant 5.000000e-01 : f32
    %233 = vector.broadcast %cst_97 : f32 to vector<8x128xf32>
    %234 = arith.addf %232, %233 : vector<8x128xf32>
    %cst_98 = arith.constant 1.000000e+00 : f32
    %235 = vector.broadcast %cst_98 : f32 to vector<8x128xf32>
    %236 = arith.subf %235, %234 : vector<8x128xf32>
    %237 = arith.mulf %225, %236 : vector<8x128xf32>
    %cst_99 = arith.constant dense<0.000000e+00> : vector<8x128xf32>
    %238 = tpu.matmul %234, %3, %cst_99 {dimension_numbers = #tpu.dot_dimension_numbers<[1], [0], [0], [1], [0, 0, 1, 1], [], []>} : vector<8x128xf32>, vector<128x128xf32>, vector<8x128xf32> -> vector<8x128xf32>
    %239 = arith.addf %238, %6 : vector<8x128xf32>
    %cst_100 = arith.constant 0.899999976 : f32
    %240 = vector.broadcast %cst_100 : f32 to vector<8x128xf32>
    %241 = arith.mulf %240, %220 : vector<8x128xf32>
    %242 = arith.addf %241, %239 : vector<8x128xf32>
    %cst_101 = arith.constant 1.000000e+00 : f32
    %243 = vector.broadcast %cst_101 : f32 to vector<8x128xf32>
    %244 = arith.subf %242, %243 : vector<8x128xf32>
    %cst_102 = arith.constant 5.000000e+00 : f32
    %245 = vector.broadcast %cst_102 : f32 to vector<8x128xf32>
    %246 = arith.mulf %245, %244 : vector<8x128xf32>
    %247 = math.tanh %246 : vector<8x128xf32>
    %cst_103 = arith.constant 5.000000e-01 : f32
    %248 = vector.broadcast %cst_103 : f32 to vector<8x128xf32>
    %249 = arith.mulf %248, %247 : vector<8x128xf32>
    %cst_104 = arith.constant 5.000000e-01 : f32
    %250 = vector.broadcast %cst_104 : f32 to vector<8x128xf32>
    %251 = arith.addf %249, %250 : vector<8x128xf32>
    %cst_105 = arith.constant 1.000000e+00 : f32
    %252 = vector.broadcast %cst_105 : f32 to vector<8x128xf32>
    %253 = arith.subf %252, %251 : vector<8x128xf32>
    %254 = arith.mulf %242, %253 : vector<8x128xf32>
    %cst_106 = arith.constant 0.899999976 : f32
    %255 = vector.broadcast %cst_106 : f32 to vector<8x128xf32>
    %256 = arith.mulf %255, %237 : vector<8x128xf32>
    %257 = vector.extract_strided_slice %16 {offsets = [0, 7, 0], sizes = [8, 1, 128], strides = [1, 1, 1]} : vector<8x8x128xf32> to vector<8x1x128xf32>
    %258 = vector.shape_cast %257 : vector<8x1x128xf32> to vector<8x128xf32>
    %259 = arith.addf %256, %258 : vector<8x128xf32>
    %cst_107 = arith.constant 1.000000e+00 : f32
    %260 = vector.broadcast %cst_107 : f32 to vector<8x128xf32>
    %261 = arith.subf %259, %260 : vector<8x128xf32>
    %cst_108 = arith.constant 5.000000e+00 : f32
    %262 = vector.broadcast %cst_108 : f32 to vector<8x128xf32>
    %263 = arith.mulf %262, %261 : vector<8x128xf32>
    %264 = math.tanh %263 : vector<8x128xf32>
    %cst_109 = arith.constant 5.000000e-01 : f32
    %265 = vector.broadcast %cst_109 : f32 to vector<8x128xf32>
    %266 = arith.mulf %265, %264 : vector<8x128xf32>
    %cst_110 = arith.constant 5.000000e-01 : f32
    %267 = vector.broadcast %cst_110 : f32 to vector<8x128xf32>
    %268 = arith.addf %266, %267 : vector<8x128xf32>
    %cst_111 = arith.constant 1.000000e+00 : f32
    %269 = vector.broadcast %cst_111 : f32 to vector<8x128xf32>
    %270 = arith.subf %269, %268 : vector<8x128xf32>
    %271 = arith.mulf %259, %270 : vector<8x128xf32>
    %cst_112 = arith.constant dense<0.000000e+00> : vector<8x128xf32>
    %272 = tpu.matmul %268, %3, %cst_112 {dimension_numbers = #tpu.dot_dimension_numbers<[1], [0], [0], [1], [0, 0, 1, 1], [], []>} : vector<8x128xf32>, vector<128x128xf32>, vector<8x128xf32> -> vector<8x128xf32>
    %273 = arith.addf %272, %6 : vector<8x128xf32>
    %cst_113 = arith.constant 0.899999976 : f32
    %274 = vector.broadcast %cst_113 : f32 to vector<8x128xf32>
    %275 = arith.mulf %274, %254 : vector<8x128xf32>
    %276 = arith.addf %275, %273 : vector<8x128xf32>
    %cst_114 = arith.constant 1.000000e+00 : f32
    %277 = vector.broadcast %cst_114 : f32 to vector<8x128xf32>
    %278 = arith.subf %276, %277 : vector<8x128xf32>
    %cst_115 = arith.constant 5.000000e+00 : f32
    %279 = vector.broadcast %cst_115 : f32 to vector<8x128xf32>
    %280 = arith.mulf %279, %278 : vector<8x128xf32>
    %281 = math.tanh %280 : vector<8x128xf32>
    %cst_116 = arith.constant 5.000000e-01 : f32
    %282 = vector.broadcast %cst_116 : f32 to vector<8x128xf32>
    %283 = arith.mulf %282, %281 : vector<8x128xf32>
    %cst_117 = arith.constant 5.000000e-01 : f32
    %284 = vector.broadcast %cst_117 : f32 to vector<8x128xf32>
    %285 = arith.addf %283, %284 : vector<8x128xf32>
    %cst_118 = arith.constant 1.000000e+00 : f32
    %286 = vector.broadcast %cst_118 : f32 to vector<8x128xf32>
    %287 = arith.subf %286, %285 : vector<8x128xf32>
    %288 = arith.mulf %276, %287 : vector<8x128xf32>
    %289 = vector.shape_cast %47 : vector<8x128xf32> to vector<8x1x128xf32>
    %290 = vector.shape_cast %81 : vector<8x128xf32> to vector<8x1x128xf32>
    %291 = vector.shape_cast %115 : vector<8x128xf32> to vector<8x1x128xf32>
    %292 = vector.shape_cast %149 : vector<8x128xf32> to vector<8x1x128xf32>
    %293 = vector.shape_cast %183 : vector<8x128xf32> to vector<8x1x128xf32>
    %294 = vector.shape_cast %217 : vector<8x128xf32> to vector<8x1x128xf32>
    %295 = vector.shape_cast %251 : vector<8x128xf32> to vector<8x1x128xf32>
    %296 = vector.shape_cast %285 : vector<8x128xf32> to vector<8x1x128xf32>
    %297 = tpu.concatenate %289, %290, %291, %292, %293, %294, %295, %296 in 1 : vector<8x1x128xf32>, vector<8x1x128xf32>, vector<8x1x128xf32>, vector<8x1x128xf32>, vector<8x1x128xf32>, vector<8x1x128xf32>, vector<8x1x128xf32>, vector<8x1x128xf32> -> vector<8x8x128xf32>
    %c0_119 = arith.constant 0 : index
    %c0_120 = arith.constant 0 : index
    %c0_121 = arith.constant 0 : index
    %298 = vector.load %arg7[%c0_119, %c0_120, %c0_121] : memref<8x8x128xf32, #tpu.memory_space<vmem>>, vector<8x8x128xf32>
    tpu.vector_store %arg7[%c0_119, %c0_120, %c0_121], %297 {strides = array<i32>} : memref<8x8x128xf32, #tpu.memory_space<vmem>>, vector<8x8x128xf32>,
    %c0_122 = arith.constant 0 : index
    %c0_123 = arith.constant 0 : index
    %299 = vector.load %arg8[%c0_122, %c0_123] : memref<8x128xf32, #tpu.memory_space<vmem>>, vector<8x128xf32>
    tpu.vector_store %arg8[%c0_122, %c0_123], %271 {strides = array<i32>} : memref<8x128xf32, #tpu.memory_space<vmem>>, vector<8x128xf32>,
    %c0_124 = arith.constant 0 : index
    %c0_125 = arith.constant 0 : index
    %300 = vector.load %arg9[%c0_124, %c0_125] : memref<8x128xf32, #tpu.memory_space<vmem>>, vector<8x128xf32>
    tpu.vector_store %arg9[%c0_124, %c0_125], %288 {strides = array<i32>} : memref<8x128xf32, #tpu.memory_space<vmem>>, vector<8x128xf32>,
    return
  }
  func.func @transform_0(%arg0: i32, %arg1: i32) -> (i32, i32, i32) {
    %c0_i32 = arith.constant 0 : i32
    %c0_i32_0 = arith.constant 0 : i32
    return %arg0, %arg1, %c0_i32 : i32, i32, i32
  }
  func.func @transform_1(%arg0: i32, %arg1: i32) -> (i32, i32) {
    %c0_i32 = arith.constant 0 : i32
    %c0_i32_0 = arith.constant 0 : i32
    %c0_i32_1 = arith.constant 0 : i32
    return %c0_i32, %c0_i32_0 : i32, i32
  }
  func.func @transform_2(%arg0: i32, %arg1: i32) -> (i32, i32) {
    %c0_i32 = arith.constant 0 : i32
    %c0_i32_0 = arith.constant 0 : i32
    %c0_i32_1 = arith.constant 0 : i32
    return %c0_i32, %c0_i32_0 : i32, i32
  }
  func.func @transform_3(%arg0: i32, %arg1: i32) -> (i32, i32) {
    %c0_i32 = arith.constant 0 : i32
    %c0_i32_0 = arith.constant 0 : i32
    %c0_i32_1 = arith.constant 0 : i32
    return %c0_i32, %c0_i32_0 : i32, i32
  }
  func.func @transform_4(%arg0: i32, %arg1: i32) -> (i32, i32) {
    %c0_i32 = arith.constant 0 : i32
    %c0_i32_0 = arith.constant 0 : i32
    %c0_i32_1 = arith.constant 0 : i32
    return %c0_i32, %c0_i32_0 : i32, i32
  }
  func.func @transform_5(%arg0: i32, %arg1: i32) -> (i32, i32, i32) {
    %c0_i32 = arith.constant 0 : i32
    %c0_i32_0 = arith.constant 0 : i32
    return %arg0, %arg1, %c0_i32 : i32, i32, i32
  }
}

</mosaic_0001>

<llo_original>
// kernel: tpu_custom_call.1
$region0: #{tpu_custom_call.1}
  #allocation0 [shape = 'u32[]', space=smem, size = 0x4, offset = 0x4, fixed_abs, tag = 'smem constant byte address 0x4 - core index']
  #allocation1 [shape = 'u32[144,128]{1,0:T(1,128)}', space=vmem, size = 0x12000, scoped, tag = 'internal scratch']
  #allocation2 [shape = 'f32[8,128]{1,0:T(8,128)}', space=vmem, size = 0x1000, scoped, tag = 'scratch operand']
  #allocation3 [shape = 'f32[8,128]{1,0:T(8,128)}', space=vmem, size = 0x1000, scoped, tag = 'scratch operand']
  %s0 = inlined_call_operand.hbm [shape: f32[8,8,32], index: 0, kind: input, shape index: {}]
  %s1 = inlined_call_operand.hbm [shape: f32[32,128], index: 1, kind: input, shape index: {}]
  %s2 = inlined_call_operand.vmem [shape: f32[1,128], index: 2, kind: input, shape index: {}]
  %s3 = inlined_call_operand.hbm [shape: f32[128,128], index: 3, kind: input, shape index: {}]
  %s4 = inlined_call_operand.vmem [shape: f32[1,128], index: 4, kind: input, shape index: {}]
  %s5 = inlined_call_operand.hbm [shape: f32[8,8,128], index: 5, kind: output, shape index: {}]
  %s6 = sld [smem:[#allocation0]]
  $region46: #{tpu_custom_call.1} parent=0
    _
  %s8 = ssub.s32 1, %s6
  %s9 = scalar_select 0, %s8, %s6
  $region1: #{tpu_custom_call.1} parent=0
    #allocation4 [shape = 'u8[32768]{0}', space=vmem, size = 0x8000, scoped, tag = 'input window, operand 0, single buffered']
    #allocation5 [shape = 's32[1]{0}', space=sflag, size = 0x4, scoped, tag = 'scoped memory for tpu_custom_call.1']
    #allocation6 [shape = 's32[1]{0}', space=sflag, size = 0x4, scoped, tag = 'scoped memory for tpu_custom_call.1']
    #allocation7 [shape = 'u8[16384]{0}', space=vmem, size = 0x4000, scoped, tag = 'input window, operand 1, single buffered']
    #allocation8 [shape = 's32[1]{0}', space=sflag, size = 0x4, scoped, tag = 'scoped memory for tpu_custom_call.1']
    #allocation9 [shape = 'u8[65536]{0}', space=vmem, size = 0x10000, scoped, tag = 'input window, operand 3, single buffered']
    #allocation10 [shape = 'u8[32768]{0}', space=vmem, size = 0x8000, scoped, tag = 'output window, operand 0, single buffered']
    %10 = vsyncpa [#allocation5], 0
    %11 = vsyncpa [#allocation8], 0
    %12 = vsyncpa [#allocation6], 0
    // Predicated region
    $region2: #{tpu_custom_call.1} parent=1 // pred_check
      _
    $region3: #{tpu_custom_call.1} parent=1 // pred_check_branch
      %14 = sbr.rel (0) target = $region5
    $region4: #{tpu_custom_call.1} parent=1 // pred_region
      %s16 = ssub.s32 1024, 1024
      %17 = vsyncadd [#allocation5], %s16
      %s18 = sshll.u32 [#allocation4], 4
      %s19 = int_to_ptr.vmem [resolvable:$true] %s18
      %24 = dma.hbm_to_vmem [thread:$0]  %s0, 1024, %s19, [#allocation5], 128, 128, 8
    $region5: #{tpu_custom_call.1} parent=1 // pred_fallthru
      _
    // Predicated region
    $region6: #{tpu_custom_call.1} parent=1 // pred_check
      _
    $region7: #{tpu_custom_call.1} parent=1 // pred_check_branch
      %26 = sbr.rel (0) target = $region9
    $region8: #{tpu_custom_call.1} parent=1 // pred_region
      %s28 = ssub.s32 512, 512
      %29 = vsyncadd [#allocation8], %s28
      %s30 = sshll.u32 [#allocation7], 4
      %s31 = int_to_ptr.vmem [resolvable:$true] %s30
      %36 = dma.hbm_to_vmem [thread:$0]  %s1, 512, %s31, [#allocation8], 128, 128, 8
    $region9: #{tpu_custom_call.1} parent=1 // pred_fallthru
      _
    // Predicated region
    $region10: #{tpu_custom_call.1} parent=1 // pred_check
      _
    $region11: #{tpu_custom_call.1} parent=1 // pred_check_branch
      %38 = sbr.rel (0) target = $region13
    $region12: #{tpu_custom_call.1} parent=1 // pred_region
      _
    $region13: #{tpu_custom_call.1} parent=1 // pred_fallthru
      _
    // Predicated region
    $region14: #{tpu_custom_call.1} parent=1 // pred_check
      _
    $region15: #{tpu_custom_call.1} parent=1 // pred_check_branch
      %40 = sbr.rel (0) target = $region17
    $region16: #{tpu_custom_call.1} parent=1 // pred_region
      %s42 = ssub.s32 2048, 2048
      %43 = vsyncadd [#allocation8], %s42
      %s44 = sshll.u32 [#allocation9], 4
      %s45 = int_to_ptr.vmem [resolvable:$true] %s44
      %50 = dma.hbm_to_vmem [thread:$0]  %s3, 2048, %s45, [#allocation8], 128, 128, 8
    $region17: #{tpu_custom_call.1} parent=1 // pred_fallthru
      _
    // Predicated region
    $region18: #{tpu_custom_call.1} parent=1 // pred_check
      _
    $region19: #{tpu_custom_call.1} parent=1 // pred_check_branch
      %52 = sbr.rel (0) target = $region21
    $region20: #{tpu_custom_call.1} parent=1 // pred_region
      _
    $region21: #{tpu_custom_call.1} parent=1 // pred_fallthru
      _
    // Predicated region
    $region22: #{tpu_custom_call.1} parent=1 // pred_check
      _
    $region23: #{tpu_custom_call.1} parent=1 // pred_check_branch
      %54 = sbr.rel (0) target = $region25
    $region24: #{tpu_custom_call.1} parent=1 // pred_region
      %55 = dma.done [#allocation5], 1024
    $region25: #{tpu_custom_call.1} parent=1 // pred_fallthru
      _
    // Predicated region
    $region26: #{tpu_custom_call.1} parent=1 // pred_check
      _
    $region27: #{tpu_custom_call.1} parent=1 // pred_check_branch
      %57 = sbr.rel (0) target = $region29
    $region28: #{tpu_custom_call.1} parent=1 // pred_region
      %58 = dma.done [#allocation8], 512
    $region29: #{tpu_custom_call.1} parent=1 // pred_fallthru
      _
    // Predicated region
    $region30: #{tpu_custom_call.1} parent=1 // pred_check
      _
    $region31: #{tpu_custom_call.1} parent=1 // pred_check_branch
      %60 = sbr.rel (0) target = $region33
    $region32: #{tpu_custom_call.1} parent=1 // pred_region
      %61 = dma.done [#allocation8], 2048
    $region33: #{tpu_custom_call.1} parent=1 // pred_fallthru
      _
    %p62 = scmp.eq.s32.totalorder 0, 0
    // Predicated region
    $region34: #{tpu_custom_call.1} parent=1 // pred_check
      %p63 = pneg %p62
    $region35: #{tpu_custom_call.1} parent=1 // pred_check_branch
      %65 = sbr.rel (%p63) target = $region37
    $region36: #{tpu_custom_call.1} parent=1 // pred_region
      %66 = vst [vmem:[#allocation2] sm:$0xff] 0.0
      %67 = vst [vmem:[#allocation3] sm:$0xff] 0.0
    $region37: #{tpu_custom_call.1} parent=1 // pred_fallthru
      _
    %v68 = vld [vmem:[#allocation9] sm:$0xff]
    %v69 = vld [vmem:[#allocation9 + $0x8] sm:$0xff]
    %v70 = vld [vmem:[#allocation9 + $0x10] sm:$0xff]
    %v71 = vld [vmem:[#allocation9 + $0x18] sm:$0xff]
    %v72 = vld [vmem:[#allocation9 + $0x20] sm:$0xff]
    %v73 = vld [vmem:[#allocation9 + $0x28] sm:$0xff]
    %v74 = vld [vmem:[#allocation9 + $0x30] sm:$0xff]
    %v75 = vld [vmem:[#allocation9 + $0x38] sm:$0xff]
    %v76 = vld [vmem:[#allocation9 + $0x40] sm:$0xff]
    %v77 = vld [vmem:[#allocation9 + $0x48] sm:$0xff]
    %v78 = vld [vmem:[#allocation9 + $0x50] sm:$0xff]
    %v79 = vld [vmem:[#allocation9 + $0x58] sm:$0xff]
    %v80 = vld [vmem:[#allocation9 + $0x60] sm:$0xff]
    %v81 = vld [vmem:[#allocation9 + $0x68] sm:$0xff]
    %v82 = vld [vmem:[#allocation9 + $0x70] sm:$0xff]
    %v83 = vld [vmem:[#allocation9 + $0x78] sm:$0xff]
    %v84 = vld [vmem:[%s4] sm:$0x1]
    %v86 = vlaneseq
    %v87 = vshrl.u32 %v86, 7
    %v88 = vsub.s32 0, %v87
    %v89 = vrot.slane %v84, %v88
    %v91 = vld [vmem:[#allocation2] sm:$0xff]
    %v92 = vld [vmem:[#allocation3] sm:$0xff]
    %v93 = vld [vmem:[#allocation4] sm:$0xff]
    %v94 = vld [vmem:[#allocation4 + $0x8] sm:$0xff]
    %v95 = vld [vmem:[#allocation4 + $0x10] sm:$0xff]
    %v96 = vld [vmem:[#allocation4 + $0x18] sm:$0xff]
    %v97 = vld [vmem:[#allocation4 + $0x20] sm:$0xff]
    %v98 = vld [vmem:[#allocation4 + $0x28] sm:$0xff]
    %v99 = vld [vmem:[#allocation4 + $0x30] sm:$0xff]
    %v100 = vld [vmem:[#allocation4 + $0x38] sm:$0xff]
    %v101 = vld [vmem:[#allocation7] sm:$0xff]
    %v102 = vld [vmem:[#allocation7 + $0x8] sm:$0xff]
    %v103 = vld [vmem:[#allocation7 + $0x10] sm:$0xff]
    %v104 = vld [vmem:[#allocation7 + $0x18] sm:$0xff]
    %v105 = vld [vmem:[%s2] sm:$0x1]
    %v107 = vlaneseq
    %v108 = vshrl.u32 %v107, 7
    %v109 = vsub.s32 0, %v108
    %v110 = vrot.slane %v105, %v109
    %vm112 = vcmask 261120
    %v114 = vsel %vm112, %v93, 0
    %v117 = vsel %vm112, %v94, 0
    %v120 = vsel %vm112, %v95, 0
    %v123 = vsel %vm112, %v96, 0
    %v126 = vsel %vm112, %v97, 0
    %v129 = vsel %vm112, %v98, 0
    %v132 = vsel %vm112, %v99, 0
    %v135 = vsel %vm112, %v100, 0
    %137 = vmatprep.subr.mxu0 0.0
    %138 = vmatpush1.msra.mxu0 %v101
    %139 = vmatprep.subr.mxu0 0.0
    %140 = vmatpush1.msra.mxu0 %v102
    %141 = vmatprep.subr.mxu0 0.0
    %142 = vmatpush1.msra.mxu0 %v103
    %143 = vmatprep.subr.mxu0 0.0
    %144 = vmatpush1.msra.mxu0 %v104
    %145 = vmatprep.subr.mxu0 0.0
    %146 = vmatpush1.msra.mxu0 0.0
    %147 = vmatprep.subr.mxu0 0.0
    %148 = vmatpush1.msra.mxu0 0.0
    %149 = vmatprep.subr.mxu0 0.0
    %150 = vmatpush1.msra.mxu0 0.0
    %151 = vmatprep.subr.mxu0 0.0
    %152 = vmatpush1.msra.mxu0 0.0
    %153 = vmatprep.subr.mxu0 0.0
    %154 = vmatpush1.msra.mxu0 0.0
    %155 = vmatprep.subr.mxu0 0.0
    %156 = vmatpush1.msra.mxu0 0.0
    %157 = vmatprep.subr.mxu0 0.0
    %158 = vmatpush1.msra.mxu0 0.0
    %159 = vmatprep.subr.mxu0 0.0
    %160 = vmatpush1.msra.mxu0 0.0
    %161 = vmatprep.subr.mxu0 0.0
    %162 = vmatpush1.msra.mxu0 0.0
    %163 = vmatprep.subr.mxu0 0.0
    %164 = vmatpush1.msra.mxu0 0.0
    %165 = vmatprep.subr.mxu0 0.0
    %166 = vmatpush1.msra.mxu0 0.0
    %167 = vmatprep.subr.mxu0 0.0
    %168 = vmatpush1.msra.mxu0 0.0
    %169 = vmatprep.subr.mxu0 0.0
    %170 = vmatpush1.msra.mxu0 0.0
    %171 = vmatprep.subr.mxu0 0.0
    %172 = vmatpush1.msra.mxu0 0.0
    %173 = vmatprep.subr.mxu0 0.0
    %174 = vmatpush1.msra.mxu0 0.0
    %175 = vmatprep.subr.mxu0 0.0
    %176 = vmatpush1.msra.mxu0 0.0
    %177 = vmatprep.subr.mxu0 0.0
    %178 = vmatpush1.msra.mxu0 0.0
    %179 = vmatprep.subr.mxu0 0.0
    %180 = vmatpush1.msra.mxu0 0.0
    %181 = vmatprep.subr.mxu0 0.0
    %182 = vmatpush1.msra.mxu0 0.0
    %183 = vmatprep.subr.mxu0 0.0
    %184 = vmatpush1.msra.mxu0 0.0
    %185 = vmatprep.subr.mxu0 0.0
    %186 = vmatpush1.msra.mxu0 0.0
    %187 = vmatprep.subr.mxu0 0.0
    %188 = vmatpush1.msra.mxu0 0.0
    %189 = vmatprep.subr.mxu0 0.0
    %190 = vmatpush1.msra.mxu0 0.0
    %191 = vmatprep.subr.mxu0 0.0
    %192 = vmatpush1.msra.mxu0 0.0
    %193 = vmatprep.subr.mxu0 0.0
    %194 = vmatpush1.msra.mxu0 0.0
    %195 = vmatprep.subr.mxu0 0.0
    %196 = vmatpush1.msra.mxu0 0.0
    %197 = vmatprep.subr.mxu0 0.0
    %198 = vmatpush1.msra.mxu0 0.0
    %199 = vmatprep.subr.mxu0 0.0
    %200 = vmatpush1.msra.mxu0 0.0
    %201 = vmatprep.mubr.f32.mxu0 0.0
    %202 = vmatmul.mubr.f32.gmra.mrb[0].mxu0 %v114
    %v203 = vpop.f32.mrb[0].mxu0
    %v204 = vadd.f32 %v110, %v203
    %v205 = vpop.f32.mrb[0].mxu0
    %206 = vmatprep.mubr.f32.mxu0 0.0
    %207 = vmatmul.mubr.f32.gmra.mrb[0].mxu0 %v117
    %v208 = vpop.f32.mrb[0].mxu0
    %v209 = vadd.f32 %v110, %v208
    %v210 = vpop.f32.mrb[0].mxu0
    %211 = vmatprep.mubr.f32.mxu0 0.0
    %212 = vmatmul.mubr.f32.gmra.mrb[0].mxu0 %v120
    %v213 = vpop.f32.mrb[0].mxu0
    %v214 = vadd.f32 %v110, %v213
    %v215 = vpop.f32.mrb[0].mxu0
    %216 = vmatprep.mubr.f32.mxu0 0.0
    %217 = vmatmul.mubr.f32.gmra.mrb[0].mxu0 %v123
    %v218 = vpop.f32.mrb[0].mxu0
    %v219 = vadd.f32 %v110, %v218
    %v220 = vpop.f32.mrb[0].mxu0
    %221 = vmatprep.mubr.f32.mxu0 0.0
    %222 = vmatmul.mubr.f32.gmra.mrb[0].mxu0 %v126
    %v223 = vpop.f32.mrb[0].mxu0
    %v224 = vadd.f32 %v110, %v223
    %v225 = vpop.f32.mrb[0].mxu0
    %226 = vmatprep.mubr.f32.mxu0 0.0
    %227 = vmatmul.mubr.f32.gmra.mrb[0].mxu0 %v129
    %v228 = vpop.f32.mrb[0].mxu0
    %v229 = vadd.f32 %v110, %v228
    %v230 = vpop.f32.mrb[0].mxu0
    %231 = vmatprep.mubr.f32.mxu0 0.0
    %232 = vmatmul.mubr.f32.gmra.mrb[0].mxu0 %v132
    %v233 = vpop.f32.mrb[0].mxu0
    %v234 = vadd.f32 %v110, %v233
    %v235 = vpop.f32.mrb[0].mxu0
    %236 = vmatprep.mubr.f32.mxu0 0.0
    %237 = vmatmul.mubr.f32.gmra.mrb[0].mxu0 %v135
    %v238 = vpop.f32.mrb[0].mxu0
    %v239 = vadd.f32 %v110, %v238
    %v240 = vpop.f32.mrb[0].mxu0
    %241 = vdwg.mxu0
    %v242 = vmul.f32 %v91, 0.9
    %v251 = vrot.slane %v209, 7
    %vm252 = vcmask 1041409
    %v253 = vsel %vm252, %v251, %v204
    %v254 = vrot.slane %v214, 6
    %vm255 = vcmask 1042434
    %v256 = vsel %vm255, %v254, %v253
    %v257 = vrot.slane %v219, 5
    %vm258 = vcmask 1043459
    %v259 = vsel %vm258, %v257, %v256
    %v260 = vrot.slane %v224, 4
    %vm261 = vcmask 1044484
    %v262 = vsel %vm261, %v260, %v259
    %v263 = vrot.slane %v229, 3
    %vm264 = vcmask 1045509
    %v265 = vsel %vm264, %v263, %v262
    %v266 = vrot.slane %v234, 2
    %vm267 = vcmask 1046534
    %v268 = vsel %vm267, %v266, %v265
    %v269 = vrot.slane %v239, 1
    %vm270 = vcmask 1047559
    %v271 = vsel %vm270, %v269, %v268
    %v273 = vadd.f32 %v242, %v271
    %v274 = vsub.f32 %v273, 1.0
    %v275 = vmul.f32 %v274, 5.0
    %v276 = vtanh.pop %v275
    %v277 = vmul.f32 %v276, 0.5
    %v278 = vadd.f32 %v277, 0.5
    %v279 = vsub.f32 1.0, %v278
    %v280 = vmul.f32 %v273, %v279
    %281 = vmatprep.subr.mxu0 0.0
    %282 = vmatpush1.msra.mxu0 %v68
    %283 = vmatprep.subr.mxu0 0.0
    %284 = vmatpush1.msra.mxu0 %v69
    %285 = vmatprep.subr.mxu0 0.0
    %286 = vmatpush1.msra.mxu0 %v70
    %287 = vmatprep.subr.mxu0 0.0
    %288 = vmatpush1.msra.mxu0 %v71
    %289 = vmatprep.subr.mxu0 0.0
    %290 = vmatpush1.msra.mxu0 %v72
    %291 = vmatprep.subr.mxu0 0.0
    %292 = vmatpush1.msra.mxu0 %v73
    %293 = vmatprep.subr.mxu0 0.0
    %294 = vmatpush1.msra.mxu0 %v74
    %295 = vmatprep.subr.mxu0 0.0
    %296 = vmatpush1.msra.mxu0 %v75
    %297 = vmatprep.subr.mxu0 0.0
    %298 = vmatpush1.msra.mxu0 %v76
    %299 = vmatprep.subr.mxu0 0.0
    %300 = vmatpush1.msra.mxu0 %v77
    %301 = vmatprep.subr.mxu0 0.0
    %302 = vmatpush1.msra.mxu0 %v78
    %303 = vmatprep.subr.mxu0 0.0
    %304 = vmatpush1.msra.mxu0 %v79
    %305 = vmatprep.subr.mxu0 0.0
    %306 = vmatpush1.msra.mxu0 %v80
    %307 = vmatprep.subr.mxu0 0.0
    %308 = vmatpush1.msra.mxu0 %v81
    %309 = vmatprep.subr.mxu0 0.0
    %310 = vmatpush1.msra.mxu0 %v82
    %311 = vmatprep.subr.mxu0 0.0
    %312 = vmatpush1.msra.mxu0 %v83
    %313 = vmatprep.subr.mxu0 0.0
    %314 = vmatpush1.msra.mxu0 0.0
    %315 = vmatprep.subr.mxu0 0.0
    %316 = vmatpush1.msra.mxu0 0.0
    %317 = vmatprep.subr.mxu0 0.0
    %318 = vmatpush1.msra.mxu0 0.0
    %319 = vmatprep.subr.mxu0 0.0
    %320 = vmatpush1.msra.mxu0 0.0
    %321 = vmatprep.subr.mxu0 0.0
    %322 = vmatpush1.msra.mxu0 0.0
    %323 = vmatprep.subr.mxu0 0.0
    %324 = vmatpush1.msra.mxu0 0.0
    %325 = vmatprep.subr.mxu0 0.0
    %326 = vmatpush1.msra.mxu0 0.0
    %327 = vmatprep.subr.mxu0 0.0
    %328 = vmatpush1.msra.mxu0 0.0
    %329 = vmatprep.subr.mxu0 0.0
    %330 = vmatpush1.msra.mxu0 0.0
    %331 = vmatprep.subr.mxu0 0.0
    %332 = vmatpush1.msra.mxu0 0.0
    %333 = vmatprep.subr.mxu0 0.0
    %334 = vmatpush1.msra.mxu0 0.0
    %335 = vmatprep.subr.mxu0 0.0
    %336 = vmatpush1.msra.mxu0 0.0
    %337 = vmatprep.subr.mxu0 0.0
    %338 = vmatpush1.msra.mxu0 0.0
    %339 = vmatprep.subr.mxu0 0.0
    %340 = vmatpush1.msra.mxu0 0.0
    %341 = vmatprep.subr.mxu0 0.0
    %342 = vmatpush1.msra.mxu0 0.0
    %343 = vmatprep.subr.mxu0 0.0
    %344 = vmatpush1.msra.mxu0 0.0
    %345 = vmatprep.mubr.f32.mxu0 0.0
    %346 = vmatmul.mubr.f32.gmra.mrb[0].mxu0 %v278
    %v347 = vpop.f32.mrb[0].mxu0
    %v348 = vadd.f32 %v89, %v347
    %v349 = vpop.f32.mrb[0].mxu0
    %350 = vdwg.mxu0
    %v351 = vmul.f32 %v92, 0.9
    %v352 = vadd.f32 %v351, %v348
    %v353 = vsub.f32 %v352, 1.0
    %v354 = vmul.f32 %v353, 5.0
    %v355 = vtanh.pop %v354
    %v356 = vmul.f32 %v355, 0.5
    %v357 = vadd.f32 %v356, 0.5
    %v358 = vsub.f32 1.0, %v357
    %v359 = vmul.f32 %v352, %v358
    %v360 = vmul.f32 %v280, 0.9
    %v361 = vrot.slane %v204, 1
    %v362 = vsel %vm252, %v209, %v361
    %v363 = vrot.slane %v214, 7
    %v364 = vsel %vm255, %v363, %v362
    %v365 = vrot.slane %v219, 6
    %v366 = vsel %vm258, %v365, %v364
    %v367 = vrot.slane %v224, 5
    %v368 = vsel %vm261, %v367, %v366
    %v369 = vrot.slane %v229, 4
    %v370 = vsel %vm264, %v369, %v368
    %v371 = vrot.slane %v234, 3
    %v372 = vsel %vm267, %v371, %v370
    %v373 = vrot.slane %v239, 2
    %v374 = vsel %vm270, %v373, %v372
    %v376 = vadd.f32 %v360, %v374
    %v377 = vsub.f32 %v376, 1.0
    %v378 = vmul.f32 %v377, 5.0
    %v379 = vtanh.pop %v378
    %v380 = vmul.f32 %v379, 0.5
    %v381 = vadd.f32 %v380, 0.5
    %v382 = vsub.f32 1.0, %v381
    %v383 = vmul.f32 %v376, %v382
    %384 = vmatprep.subr.mxu0 0.0
    %385 = vmatpush1.msra.mxu0 %v68
    %386 = vmatprep.subr.mxu0 0.0
    %387 = vmatpush1.msra.mxu0 %v69
    %388 = vmatprep.subr.mxu0 0.0
    %389 = vmatpush1.msra.mxu0 %v70
    %390 = vmatprep.subr.mxu0 0.0
    %391 = vmatpush1.msra.mxu0 %v71
    %392 = vmatprep.subr.mxu0 0.0
    %393 = vmatpush1.msra.mxu0 %v72
    %394 = vmatprep.subr.mxu0 0.0
    %395 = vmatpush1.msra.mxu0 %v73
    %396 = vmatprep.subr.mxu0 0.0
    %397 = vmatpush1.msra.mxu0 %v74
    %398 = vmatprep.subr.mxu0 0.0
    %399 = vmatpush1.msra.mxu0 %v75
    %400 = vmatprep.subr.mxu0 0.0
    %401 = vmatpush1.msra.mxu0 %v76
    %402 = vmatprep.subr.mxu0 0.0
    %403 = vmatpush1.msra.mxu0 %v77
    %404 = vmatprep.subr.mxu0 0.0
    %405 = vmatpush1.msra.mxu0 %v78
    %406 = vmatprep.subr.mxu0 0.0
    %407 = vmatpush1.msra.mxu0 %v79
    %408 = vmatprep.subr.mxu0 0.0
    %409 = vmatpush1.msra.mxu0 %v80
    %410 = vmatprep.subr.mxu0 0.0
    %411 = vmatpush1.msra.mxu0 %v81
    %412 = vmatprep.subr.mxu0 0.0
    %413 = vmatpush1.msra.mxu0 %v82
    %414 = vmatprep.subr.mxu0 0.0
    %415 = vmatpush1.msra.mxu0 %v83
    %416 = vmatprep.subr.mxu0 0.0
    %417 = vmatpush1.msra.mxu0 0.0
    %418 = vmatprep.subr.mxu0 0.0
    %419 = vmatpush1.msra.mxu0 0.0
    %420 = vmatprep.subr.mxu0 0.0
    %421 = vmatpush1.msra.mxu0 0.0
    %422 = vmatprep.subr.mxu0 0.0
    %423 = vmatpush1.msra.mxu0 0.0
    %424 = vmatprep.subr.mxu0 0.0
    %425 = vmatpush1.msra.mxu0 0.0
    %426 = vmatprep.subr.mxu0 0.0
    %427 = vmatpush1.msra.mxu0 0.0
    %428 = vmatprep.subr.mxu0 0.0
    %429 = vmatpush1.msra.mxu0 0.0
    %430 = vmatprep.subr.mxu0 0.0
    %431 = vmatpush1.msra.mxu0 0.0
    %432 = vmatprep.subr.mxu0 0.0
    %433 = vmatpush1.msra.mxu0 0.0
    %434 = vmatprep.subr.mxu0 0.0
    %435 = vmatpush1.msra.mxu0 0.0
    %436 = vmatprep.subr.mxu0 0.0
    %437 = vmatpush1.msra.mxu0 0.0
    %438 = vmatprep.subr.mxu0 0.0
    %439 = vmatpush1.msra.mxu0 0.0
    %440 = vmatprep.subr.mxu0 0.0
    %441 = vmatpush1.msra.mxu0 0.0
    %442 = vmatprep.subr.mxu0 0.0
    %443 = vmatpush1.msra.mxu0 0.0
    %444 = vmatprep.subr.mxu0 0.0
    %445 = vmatpush1.msra.mxu0 0.0
    %446 = vmatprep.subr.mxu0 0.0
    %447 = vmatpush1.msra.mxu0 0.0
    %448 = vmatprep.mubr.f32.mxu0 0.0
    %449 = vmatmul.mubr.f32.gmra.mrb[0].mxu0 %v381
    %v450 = vpop.f32.mrb[0].mxu0
    %v451 = vadd.f32 %v89, %v450
    %v452 = vpop.f32.mrb[0].mxu0
    %453 = vdwg.mxu0
    %v454 = vmul.f32 %v359, 0.9
    %v455 = vadd.f32 %v454, %v451
    %v456 = vsub.f32 %v455, 1.0
    %v457 = vmul.f32 %v456, 5.0
    %v458 = vtanh.pop %v457
    %v459 = vmul.f32 %v458, 0.5
    %v460 = vadd.f32 %v459, 0.5
    %v461 = vsub.f32 1.0, %v460
    %v462 = vmul.f32 %v455, %v461
    %v463 = vmul.f32 %v383, 0.9
    %v464 = vrot.slane %v204, 2
    %v465 = vrot.slane %v209, 1
    %v466 = vsel %vm252, %v465, %v464
    %v467 = vsel %vm255, %v214, %v466
    %v468 = vrot.slane %v219, 7
    %v469 = vsel %vm258, %v468, %v467
    %v470 = vrot.slane %v224, 6
    %v471 = vsel %vm261, %v470, %v469
    %v472 = vrot.slane %v229, 5
    %v473 = vsel %vm264, %v472, %v471
    %v474 = vrot.slane %v234, 4
    %v475 = vsel %vm267, %v474, %v473
    %v476 = vrot.slane %v239, 3
    %v477 = vsel %vm270, %v476, %v475
    %v479 = vadd.f32 %v463, %v477
    %v480 = vsub.f32 %v479, 1.0
    %v481 = vmul.f32 %v480, 5.0
    %v482 = vtanh.pop %v481
    %v483 = vmul.f32 %v482, 0.5
    %v484 = vadd.f32 %v483, 0.5
    %v485 = vsub.f32 1.0, %v484
    %v486 = vmul.f32 %v479, %v485
    %487 = vmatprep.subr.mxu0 0.0
    %488 = vmatpush1.msra.mxu0 %v68
    %489 = vmatprep.subr.mxu0 0.0
    %490 = vmatpush1.msra.mxu0 %v69
    %491 = vmatprep.subr.mxu0 0.0
    %492 = vmatpush1.msra.mxu0 %v70
    %493 = vmatprep.subr.mxu0 0.0
    %494 = vmatpush1.msra.mxu0 %v71
    %495 = vmatprep.subr.mxu0 0.0
    %496 = vmatpush1.msra.mxu0 %v72
    %497 = vmatprep.subr.mxu0 0.0
    %498 = vmatpush1.msra.mxu0 %v73
    %499 = vmatprep.subr.mxu0 0.0
    %500 = vmatpush1.msra.mxu0 %v74
    %501 = vmatprep.subr.mxu0 0.0
    %502 = vmatpush1.msra.mxu0 %v75
    %503 = vmatprep.subr.mxu0 0.0
    %504 = vmatpush1.msra.mxu0 %v76
    %505 = vmatprep.subr.mxu0 0.0
    %506 = vmatpush1.msra.mxu0 %v77
    %507 = vmatprep.subr.mxu0 0.0
    %508 = vmatpush1.msra.mxu0 %v78
    %509 = vmatprep.subr.mxu0 0.0
    %510 = vmatpush1.msra.mxu0 %v79
    %511 = vmatprep.subr.mxu0 0.0
    %512 = vmatpush1.msra.mxu0 %v80
    %513 = vmatprep.subr.mxu0 0.0
    %514 = vmatpush1.msra.mxu0 %v81
    %515 = vmatprep.subr.mxu0 0.0
    %516 = vmatpush1.msra.mxu0 %v82
    %517 = vmatprep.subr.mxu0 0.0
    %518 = vmatpush1.msra.mxu0 %v83
    %519 = vmatprep.subr.mxu0 0.0
    %520 = vmatpush1.msra.mxu0 0.0
    %521 = vmatprep.subr.mxu0 0.0
    %522 = vmatpush1.msra.mxu0 0.0
    %523 = vmatprep.subr.mxu0 0.0
    %524 = vmatpush1.msra.mxu0 0.0
    %525 = vmatprep.subr.mxu0 0.0
    %526 = vmatpush1.msra.mxu0 0.0
    %527 = vmatprep.subr.mxu0 0.0
    %528 = vmatpush1.msra.mxu0 0.0
    %529 = vmatprep.subr.mxu0 0.0
    %530 = vmatpush1.msra.mxu0 0.0
    %531 = vmatprep.subr.mxu0 0.0
    %532 = vmatpush1.msra.mxu0 0.0
    %533 = vmatprep.subr.mxu0 0.0
    %534 = vmatpush1.msra.mxu0 0.0
    %535 = vmatprep.subr.mxu0 0.0
    %536 = vmatpush1.msra.mxu0 0.0
    %537 = vmatprep.subr.mxu0 0.0
    %538 = vmatpush1.msra.mxu0 0.0
    %539 = vmatprep.subr.mxu0 0.0
    %540 = vmatpush1.msra.mxu0 0.0
    %541 = vmatprep.subr.mxu0 0.0
    %542 = vmatpush1.msra.mxu0 0.0
    %543 = vmatprep.subr.mxu0 0.0
    %544 = vmatpush1.msra.mxu0 0.0
    %545 = vmatprep.subr.mxu0 0.0
    %546 = vmatpush1.msra.mxu0 0.0
    %547 = vmatprep.subr.mxu0 0.0
    %548 = vmatpush1.msra.mxu0 0.0
    %549 = vmatprep.subr.mxu0 0.0
    %550 = vmatpush1.msra.mxu0 0.0
    %551 = vmatprep.mubr.f32.mxu0 0.0
    %552 = vmatmul.mubr.f32.gmra.mrb[0].mxu0 %v484
    %v553 = vpop.f32.mrb[0].mxu0
    %v554 = vadd.f32 %v89, %v553
    %v555 = vpop.f32.mrb[0].mxu0
    %556 = vdwg.mxu0
    %v557 = vmul.f32 %v462, 0.9
    %v558 = vadd.f32 %v557, %v554
    %v559 = vsub.f32 %v558, 1.0
    %v560 = vmul.f32 %v559, 5.0
    %v561 = vtanh.pop %v560
    %v562 = vmul.f32 %v561, 0.5
    %v563 = vadd.f32 %v562, 0.5
    %v564 = vsub.f32 1.0, %v563
    %v565 = vmul.f32 %v558, %v564
    %v566 = vmul.f32 %v486, 0.9
    %v567 = vrot.slane %v204, 3
    %v568 = vrot.slane %v209, 2
    %v569 = vsel %vm252, %v568, %v567
    %v570 = vrot.slane %v214, 1
    %v571 = vsel %vm255, %v570, %v569
    %v572 = vsel %vm258, %v219, %v571
    %v573 = vrot.slane %v224, 7
    %v574 = vsel %vm261, %v573, %v572
    %v575 = vrot.slane %v229, 6
    %v576 = vsel %vm264, %v575, %v574
    %v577 = vrot.slane %v234, 5
    %v578 = vsel %vm267, %v577, %v576
    %v579 = vrot.slane %v239, 4
    %v580 = vsel %vm270, %v579, %v578
    %v582 = vadd.f32 %v566, %v580
    %v583 = vsub.f32 %v582, 1.0
    %v584 = vmul.f32 %v583, 5.0
    %v585 = vtanh.pop %v584
    %v586 = vmul.f32 %v585, 0.5
    %v587 = vadd.f32 %v586, 0.5
    %v588 = vsub.f32 1.0, %v587
    %v589 = vmul.f32 %v582, %v588
    %590 = vmatprep.subr.mxu0 0.0
    %591 = vmatpush1.msra.mxu0 %v68
    %592 = vmatprep.subr.mxu0 0.0
    %593 = vmatpush1.msra.mxu0 %v69
    %594 = vmatprep.subr.mxu0 0.0
    %595 = vmatpush1.msra.mxu0 %v70
    %596 = vmatprep.subr.mxu0 0.0
    %597 = vmatpush1.msra.mxu0 %v71
    %598 = vmatprep.subr.mxu0 0.0
    %599 = vmatpush1.msra.mxu0 %v72
    %600 = vmatprep.subr.mxu0 0.0
    %601 = vmatpush1.msra.mxu0 %v73
    %602 = vmatprep.subr.mxu0 0.0
    %603 = vmatpush1.msra.mxu0 %v74
    %604 = vmatprep.subr.mxu0 0.0
    %605 = vmatpush1.msra.mxu0 %v75
    %606 = vmatprep.subr.mxu0 0.0
    %607 = vmatpush1.msra.mxu0 %v76
    %608 = vmatprep.subr.mxu0 0.0
    %609 = vmatpush1.msra.mxu0 %v77
    %610 = vmatprep.subr.mxu0 0.0
    %611 = vmatpush1.msra.mxu0 %v78
    %612 = vmatprep.subr.mxu0 0.0
    %613 = vmatpush1.msra.mxu0 %v79
    %614 = vmatprep.subr.mxu0 0.0
    %615 = vmatpush1.msra.mxu0 %v80
    %616 = vmatprep.subr.mxu0 0.0
    %617 = vmatpush1.msra.mxu0 %v81
    %618 = vmatprep.subr.mxu0 0.0
    %619 = vmatpush1.msra.mxu0 %v82
    %620 = vmatprep.subr.mxu0 0.0
    %621 = vmatpush1.msra.mxu0 %v83
    %622 = vmatprep.subr.mxu0 0.0
    %623 = vmatpush1.msra.mxu0 0.0
    %624 = vmatprep.subr.mxu0 0.0
    %625 = vmatpush1.msra.mxu0 0.0
    %626 = vmatprep.subr.mxu0 0.0
    %627 = vmatpush1.msra.mxu0 0.0
    %628 = vmatprep.subr.mxu0 0.0
    %629 = vmatpush1.msra.mxu0 0.0
    %630 = vmatprep.subr.mxu0 0.0
    %631 = vmatpush1.msra.mxu0 0.0
    %632 = vmatprep.subr.mxu0 0.0
    %633 = vmatpush1.msra.mxu0 0.0
    %634 = vmatprep.subr.mxu0 0.0
    %635 = vmatpush1.msra.mxu0 0.0
    %636 = vmatprep.subr.mxu0 0.0
    %637 = vmatpush1.msra.mxu0 0.0
    %638 = vmatprep.subr.mxu0 0.0
    %639 = vmatpush1.msra.mxu0 0.0
    %640 = vmatprep.subr.mxu0 0.0
    %641 = vmatpush1.msra.mxu0 0.0
    %642 = vmatprep.subr.mxu0 0.0
    %643 = vmatpush1.msra.mxu0 0.0
    %644 = vmatprep.subr.mxu0 0.0
    %645 = vmatpush1.msra.mxu0 0.0
    %646 = vmatprep.subr.mxu0 0.0
    %647 = vmatpush1.msra.mxu0 0.0
    %648 = vmatprep.subr.mxu0 0.0
    %649 = vmatpush1.msra.mxu0 0.0
    %650 = vmatprep.subr.mxu0 0.0
    %651 = vmatpush1.msra.mxu0 0.0
    %652 = vmatprep.subr.mxu0 0.0
    %653 = vmatpush1.msra.mxu0 0.0
    %654 = vmatprep.mubr.f32.mxu0 0.0
    %655 = vmatmul.mubr.f32.gmra.mrb[0].mxu0 %v587
    %v656 = vpop.f32.mrb[0].mxu0
    %v657 = vadd.f32 %v89, %v656
    %v658 = vpop.f32.mrb[0].mxu0
    %659 = vdwg.mxu0
    %v660 = vmul.f32 %v565, 0.9
    %v661 = vadd.f32 %v660, %v657
    %v662 = vsub.f32 %v661, 1.0
    %v663 = vmul.f32 %v662, 5.0
    %v664 = vtanh.pop %v663
    %v665 = vmul.f32 %v664, 0.5
    %v666 = vadd.f32 %v665, 0.5
    %v667 = vsub.f32 1.0, %v666
    %v668 = vmul.f32 %v661, %v667
    %v669 = vmul.f32 %v589, 0.9
    %v670 = vrot.slane %v204, 4
    %v671 = vrot.slane %v209, 3
    %v672 = vsel %vm252, %v671, %v670
    %v673 = vrot.slane %v214, 2
    %v674 = vsel %vm255, %v673, %v672
    %v675 = vrot.slane %v219, 1
    %v676 = vsel %vm258, %v675, %v674
    %v677 = vsel %vm261, %v224, %v676
    %v678 = vrot.slane %v229, 7
    %v679 = vsel %vm264, %v678, %v677
    %v680 = vrot.slane %v234, 6
    %v681 = vsel %vm267, %v680, %v679
    %v682 = vrot.slane %v239, 5
    %v683 = vsel %vm270, %v682, %v681
    %v685 = vadd.f32 %v669, %v683
    %v686 = vsub.f32 %v685, 1.0
    %v687 = vmul.f32 %v686, 5.0
    %v688 = vtanh.pop %v687
    %v689 = vmul.f32 %v688, 0.5
    %v690 = vadd.f32 %v689, 0.5
    %v691 = vsub.f32 1.0, %v690
    %v692 = vmul.f32 %v685, %v691
    %693 = vmatprep.subr.mxu0 0.0
    %694 = vmatpush1.msra.mxu0 %v68
    %695 = vmatprep.subr.mxu0 0.0
    %696 = vmatpush1.msra.mxu0 %v69
    %697 = vmatprep.subr.mxu0 0.0
    %698 = vmatpush1.msra.mxu0 %v70
    %699 = vmatprep.subr.mxu0 0.0
    %700 = vmatpush1.msra.mxu0 %v71
    %701 = vmatprep.subr.mxu0 0.0
    %702 = vmatpush1.msra.mxu0 %v72
    %703 = vmatprep.subr.mxu0 0.0
    %704 = vmatpush1.msra.mxu0 %v73
    %705 = vmatprep.subr.mxu0 0.0
    %706 = vmatpush1.msra.mxu0 %v74
    %707 = vmatprep.subr.mxu0 0.0
    %708 = vmatpush1.msra.mxu0 %v75
    %709 = vmatprep.subr.mxu0 0.0
    %710 = vmatpush1.msra.mxu0 %v76
    %711 = vmatprep.subr.mxu0 0.0
    %712 = vmatpush1.msra.mxu0 %v77
    %713 = vmatprep.subr.mxu0 0.0
    %714 = vmatpush1.msra.mxu0 %v78
    %715 = vmatprep.subr.mxu0 0.0
    %716 = vmatpush1.msra.mxu0 %v79
    %717 = vmatprep.subr.mxu0 0.0
    %718 = vmatpush1.msra.mxu0 %v80
    %719 = vmatprep.subr.mxu0 0.0
    %720 = vmatpush1.msra.mxu0 %v81
    %721 = vmatprep.subr.mxu0 0.0
    %722 = vmatpush1.msra.mxu0 %v82
    %723 = vmatprep.subr.mxu0 0.0
    %724 = vmatpush1.msra.mxu0 %v83
    %725 = vmatprep.subr.mxu0 0.0
    %726 = vmatpush1.msra.mxu0 0.0
    %727 = vmatprep.subr.mxu0 0.0
    %728 = vmatpush1.msra.mxu0 0.0
    %729 = vmatprep.subr.mxu0 0.0
    %730 = vmatpush1.msra.mxu0 0.0
    %731 = vmatprep.subr.mxu0 0.0
    %732 = vmatpush1.msra.mxu0 0.0
    %733 = vmatprep.subr.mxu0 0.0
    %734 = vmatpush1.msra.mxu0 0.0
    %735 = vmatprep.subr.mxu0 0.0
    %736 = vmatpush1.msra.mxu0 0.0
    %737 = vmatprep.subr.mxu0 0.0
    %738 = vmatpush1.msra.mxu0 0.0
    %739 = vmatprep.subr.mxu0 0.0
    %740 = vmatpush1.msra.mxu0 0.0
    %741 = vmatprep.subr.mxu0 0.0
    %742 = vmatpush1.msra.mxu0 0.0
    %743 = vmatprep.subr.mxu0 0.0
    %744 = vmatpush1.msra.mxu0 0.0
    %745 = vmatprep.subr.mxu0 0.0
    %746 = vmatpush1.msra.mxu0 0.0
    %747 = vmatprep.subr.mxu0 0.0
    %748 = vmatpush1.msra.mxu0 0.0
    %749 = vmatprep.subr.mxu0 0.0
    %750 = vmatpush1.msra.mxu0 0.0
    %751 = vmatprep.subr.mxu0 0.0
    %752 = vmatpush1.msra.mxu0 0.0
    %753 = vmatprep.subr.mxu0 0.0
    %754 = vmatpush1.msra.mxu0 0.0
    %755 = vmatprep.subr.mxu0 0.0
    %756 = vmatpush1.msra.mxu0 0.0
    %757 = vmatprep.mubr.f32.mxu0 0.0
    %758 = vmatmul.mubr.f32.gmra.mrb[0].mxu0 %v690
    %v759 = vpop.f32.mrb[0].mxu0
    %v760 = vadd.f32 %v89, %v759
    %v761 = vpop.f32.mrb[0].mxu0
    %762 = vdwg.mxu0
    %v763 = vmul.f32 %v668, 0.9
    %v764 = vadd.f32 %v763, %v760
    %v765 = vsub.f32 %v764, 1.0
    %v766 = vmul.f32 %v765, 5.0
    %v767 = vtanh.pop %v766
    %v768 = vmul.f32 %v767, 0.5
    %v769 = vadd.f32 %v768, 0.5
    %v770 = vsub.f32 1.0, %v769
    %v771 = vmul.f32 %v764, %v770
    %v772 = vmul.f32 %v692, 0.9
    %v773 = vrot.slane %v204, 5
    %v774 = vrot.slane %v209, 4
    %v775 = vsel %vm252, %v774, %v773
    %v776 = vrot.slane %v214, 3
    %v777 = vsel %vm255, %v776, %v775
    %v778 = vrot.slane %v219, 2
    %v779 = vsel %vm258, %v778, %v777
    %v780 = vrot.slane %v224, 1
    %v781 = vsel %vm261, %v780, %v779
    %v782 = vsel %vm264, %v229, %v781
    %v783 = vrot.slane %v234, 7
    %v784 = vsel %vm267, %v783, %v782
    %v785 = vrot.slane %v239, 6
    %v786 = vsel %vm270, %v785, %v784
    %v788 = vadd.f32 %v772, %v786
    %v789 = vsub.f32 %v788, 1.0
    %v790 = vmul.f32 %v789, 5.0
    %v791 = vtanh.pop %v790
    %v792 = vmul.f32 %v791, 0.5
    %v793 = vadd.f32 %v792, 0.5
    %v794 = vsub.f32 1.0, %v793
    %v795 = vmul.f32 %v788, %v794
    %796 = vmatprep.subr.mxu0 0.0
    %797 = vmatpush1.msra.mxu0 %v68
    %798 = vmatprep.subr.mxu0 0.0
    %799 = vmatpush1.msra.mxu0 %v69
    %800 = vmatprep.subr.mxu0 0.0
    %801 = vmatpush1.msra.mxu0 %v70
    %802 = vmatprep.subr.mxu0 0.0
    %803 = vmatpush1.msra.mxu0 %v71
    %804 = vmatprep.subr.mxu0 0.0
    %805 = vmatpush1.msra.mxu0 %v72
    %806 = vmatprep.subr.mxu0 0.0
    %807 = vmatpush1.msra.mxu0 %v73
    %808 = vmatprep.subr.mxu0 0.0
    %809 = vmatpush1.msra.mxu0 %v74
    %810 = vmatprep.subr.mxu0 0.0
    %811 = vmatpush1.msra.mxu0 %v75
    %812 = vmatprep.subr.mxu0 0.0
    %813 = vmatpush1.msra.mxu0 %v76
    %814 = vmatprep.subr.mxu0 0.0
    %815 = vmatpush1.msra.mxu0 %v77
    %816 = vmatprep.subr.mxu0 0.0
    %817 = vmatpush1.msra.mxu0 %v78
    %818 = vmatprep.subr.mxu0 0.0
    %819 = vmatpush1.msra.mxu0 %v79
    %820 = vmatprep.subr.mxu0 0.0
    %821 = vmatpush1.msra.mxu0 %v80
    %822 = vmatprep.subr.mxu0 0.0
    %823 = vmatpush1.msra.mxu0 %v81
    %824 = vmatprep.subr.mxu0 0.0
    %825 = vmatpush1.msra.mxu0 %v82
    %826 = vmatprep.subr.mxu0 0.0
    %827 = vmatpush1.msra.mxu0 %v83
    %828 = vmatprep.subr.mxu0 0.0
    %829 = vmatpush1.msra.mxu0 0.0
    %830 = vmatprep.subr.mxu0 0.0
    %831 = vmatpush1.msra.mxu0 0.0
    %832 = vmatprep.subr.mxu0 0.0
    %833 = vmatpush1.msra.mxu0 0.0
    %834 = vmatprep.subr.mxu0 0.0
    %835 = vmatpush1.msra.mxu0 0.0
    %836 = vmatprep.subr.mxu0 0.0
    %837 = vmatpush1.msra.mxu0 0.0
    %838 = vmatprep.subr.mxu0 0.0
    %839 = vmatpush1.msra.mxu0 0.0
    %840 = vmatprep.subr.mxu0 0.0
    %841 = vmatpush1.msra.mxu0 0.0
    %842 = vmatprep.subr.mxu0 0.0
    %843 = vmatpush1.msra.mxu0 0.0
    %844 = vmatprep.subr.mxu0 0.0
    %845 = vmatpush1.msra.mxu0 0.0
    %846 = vmatprep.subr.mxu0 0.0
    %847 = vmatpush1.msra.mxu0 0.0
    %848 = vmatprep.subr.mxu0 0.0
    %849 = vmatpush1.msra.mxu0 0.0
    %850 = vmatprep.subr.mxu0 0.0
    %851 = vmatpush1.msra.mxu0 0.0
    %852 = vmatprep.subr.mxu0 0.0
    %853 = vmatpush1.msra.mxu0 0.0
    %854 = vmatprep.subr.mxu0 0.0
    %855 = vmatpush1.msra.mxu0 0.0
    %856 = vmatprep.subr.mxu0 0.0
    %857 = vmatpush1.msra.mxu0 0.0
    %858 = vmatprep.subr.mxu0 0.0
    %859 = vmatpush1.msra.mxu0 0.0
    %860 = vmatprep.mubr.f32.mxu0 0.0
    %861 = vmatmul.mubr.f32.gmra.mrb[0].mxu0 %v793
    %v862 = vpop.f32.mrb[0].mxu0
    %v863 = vadd.f32 %v89, %v862
    %v864 = vpop.f32.mrb[0].mxu0
    %865 = vdwg.mxu0
    %v866 = vmul.f32 %v771, 0.9
    %v867 = vadd.f32 %v866, %v863
    %v868 = vsub.f32 %v867, 1.0
    %v869 = vmul.f32 %v868, 5.0
    %v870 = vtanh.pop %v869
    %v871 = vmul.f32 %v870, 0.5
    %v872 = vadd.f32 %v871, 0.5
    %v873 = vsub.f32 1.0, %v872
    %v874 = vmul.f32 %v867, %v873
    %v875 = vmul.f32 %v795, 0.9
    %v876 = vrot.slane %v204, 6
    %v877 = vrot.slane %v209, 5
    %v878 = vsel %vm252, %v877, %v876
    %v879 = vrot.slane %v214, 4
    %v880 = vsel %vm255, %v879, %v878
    %v881 = vrot.slane %v219, 3
    %v882 = vsel %vm258, %v881, %v880
    %v883 = vrot.slane %v224, 2
    %v884 = vsel %vm261, %v883, %v882
    %v885 = vrot.slane %v229, 1
    %v886 = vsel %vm264, %v885, %v884
    %v887 = vsel %vm267, %v234, %v886
    %v888 = vrot.slane %v239, 7
    %v889 = vsel %vm270, %v888, %v887
    %v891 = vadd.f32 %v875, %v889
    %v892 = vsub.f32 %v891, 1.0
    %v893 = vmul.f32 %v892, 5.0
    %v894 = vtanh.pop %v893
    %v895 = vmul.f32 %v894, 0.5
    %v896 = vadd.f32 %v895, 0.5
    %v897 = vsub.f32 1.0, %v896
    %v898 = vmul.f32 %v891, %v897
    %899 = vmatprep.subr.mxu0 0.0
    %900 = vmatpush1.msra.mxu0 %v68
    %901 = vmatprep.subr.mxu0 0.0
    %902 = vmatpush1.msra.mxu0 %v69
    %903 = vmatprep.subr.mxu0 0.0
    %904 = vmatpush1.msra.mxu0 %v70
    %905 = vmatprep.subr.mxu0 0.0
    %906 = vmatpush1.msra.mxu0 %v71
    %907 = vmatprep.subr.mxu0 0.0
    %908 = vmatpush1.msra.mxu0 %v72
    %909 = vmatprep.subr.mxu0 0.0
    %910 = vmatpush1.msra.mxu0 %v73
    %911 = vmatprep.subr.mxu0 0.0
    %912 = vmatpush1.msra.mxu0 %v74
    %913 = vmatprep.subr.mxu0 0.0
    %914 = vmatpush1.msra.mxu0 %v75
    %915 = vmatprep.subr.mxu0 0.0
    %916 = vmatpush1.msra.mxu0 %v76
    %917 = vmatprep.subr.mxu0 0.0
    %918 = vmatpush1.msra.mxu0 %v77
    %919 = vmatprep.subr.mxu0 0.0
    %920 = vmatpush1.msra.mxu0 %v78
    %921 = vmatprep.subr.mxu0 0.0
    %922 = vmatpush1.msra.mxu0 %v79
    %923 = vmatprep.subr.mxu0 0.0
    %924 = vmatpush1.msra.mxu0 %v80
    %925 = vmatprep.subr.mxu0 0.0
    %926 = vmatpush1.msra.mxu0 %v81
    %927 = vmatprep.subr.mxu0 0.0
    %928 = vmatpush1.msra.mxu0 %v82
    %929 = vmatprep.subr.mxu0 0.0
    %930 = vmatpush1.msra.mxu0 %v83
    %931 = vmatprep.subr.mxu0 0.0
    %932 = vmatpush1.msra.mxu0 0.0
    %933 = vmatprep.subr.mxu0 0.0
    %934 = vmatpush1.msra.mxu0 0.0
    %935 = vmatprep.subr.mxu0 0.0
    %936 = vmatpush1.msra.mxu0 0.0
    %937 = vmatprep.subr.mxu0 0.0
    %938 = vmatpush1.msra.mxu0 0.0
    %939 = vmatprep.subr.mxu0 0.0
    %940 = vmatpush1.msra.mxu0 0.0
    %941 = vmatprep.subr.mxu0 0.0
    %942 = vmatpush1.msra.mxu0 0.0
    %943 = vmatprep.subr.mxu0 0.0
    %944 = vmatpush1.msra.mxu0 0.0
    %945 = vmatprep.subr.mxu0 0.0
    %946 = vmatpush1.msra.mxu0 0.0
    %947 = vmatprep.subr.mxu0 0.0
    %948 = vmatpush1.msra.mxu0 0.0
    %949 = vmatprep.subr.mxu0 0.0
    %950 = vmatpush1.msra.mxu0 0.0
    %951 = vmatprep.subr.mxu0 0.0
    %952 = vmatpush1.msra.mxu0 0.0
    %953 = vmatprep.subr.mxu0 0.0
    %954 = vmatpush1.msra.mxu0 0.0
    %955 = vmatprep.subr.mxu0 0.0
    %956 = vmatpush1.msra.mxu0 0.0
    %957 = vmatprep.subr.mxu0 0.0
    %958 = vmatpush1.msra.mxu0 0.0
    %959 = vmatprep.subr.mxu0 0.0
    %960 = vmatpush1.msra.mxu0 0.0
    %961 = vmatprep.subr.mxu0 0.0
    %962 = vmatpush1.msra.mxu0 0.0
    %963 = vmatprep.mubr.f32.mxu0 0.0
    %964 = vmatmul.mubr.f32.gmra.mrb[0].mxu0 %v896
    %v965 = vpop.f32.mrb[0].mxu0
    %v966 = vadd.f32 %v89, %v965
    %v967 = vpop.f32.mrb[0].mxu0
    %968 = vdwg.mxu0
    %v969 = vmul.f32 %v874, 0.9
    %v970 = vadd.f32 %v969, %v966
    %v971 = vsub.f32 %v970, 1.0
    %v972 = vmul.f32 %v971, 5.0
    %v973 = vtanh.pop %v972
    %v974 = vmul.f32 %v973, 0.5
    %v975 = vadd.f32 %v974, 0.5
    %v976 = vsub.f32 1.0, %v975
    %v977 = vmul.f32 %v970, %v976
    %v978 = vmul.f32 %v898, 0.9
    %v979 = vrot.slane %v204, 7
    %v980 = vrot.slane %v209, 6
    %v981 = vsel %vm252, %v980, %v979
    %v982 = vrot.slane %v214, 5
    %v983 = vsel %vm255, %v982, %v981
    %v984 = vrot.slane %v219, 4
    %v985 = vsel %vm258, %v984, %v983
    %v986 = vrot.slane %v224, 3
    %v987 = vsel %vm261, %v986, %v985
    %v988 = vrot.slane %v229, 2
    %v989 = vsel %vm264, %v988, %v987
    %v990 = vrot.slane %v234, 1
    %v991 = vsel %vm267, %v990, %v989
    %v992 = vsel %vm270, %v239, %v991
    %v994 = vadd.f32 %v978, %v992
    %v995 = vsub.f32 %v994, 1.0
    %v996 = vmul.f32 %v995, 5.0
    %v997 = vtanh.pop %v996
    %v998 = vmul.f32 %v997, 0.5
    %v999 = vadd.f32 %v998, 0.5
    %v1000 = vsub.f32 1.0, %v999
    %v1001 = vmul.f32 %v994, %v1000
    %1002 = vmatprep.subr.mxu0 0.0
    %1003 = vmatpush1.msra.mxu0 %v68
    %1004 = vmatprep.subr.mxu0 0.0
    %1005 = vmatpush1.msra.mxu0 %v69
    %1006 = vmatprep.subr.mxu0 0.0
    %1007 = vmatpush1.msra.mxu0 %v70
    %1008 = vmatprep.subr.mxu0 0.0
    %1009 = vmatpush1.msra.mxu0 %v71
    %1010 = vmatprep.subr.mxu0 0.0
    %1011 = vmatpush1.msra.mxu0 %v72
    %1012 = vmatprep.subr.mxu0 0.0
    %1013 = vmatpush1.msra.mxu0 %v73
    %1014 = vmatprep.subr.mxu0 0.0
    %1015 = vmatpush1.msra.mxu0 %v74
    %1016 = vmatprep.subr.mxu0 0.0
    %1017 = vmatpush1.msra.mxu0 %v75
    %1018 = vmatprep.subr.mxu0 0.0
    %1019 = vmatpush1.msra.mxu0 %v76
    %1020 = vmatprep.subr.mxu0 0.0
    %1021 = vmatpush1.msra.mxu0 %v77
    %1022 = vmatprep.subr.mxu0 0.0
    %1023 = vmatpush1.msra.mxu0 %v78
    %1024 = vmatprep.subr.mxu0 0.0
    %1025 = vmatpush1.msra.mxu0 %v79
    %1026 = vmatprep.subr.mxu0 0.0
    %1027 = vmatpush1.msra.mxu0 %v80
    %1028 = vmatprep.subr.mxu0 0.0
    %1029 = vmatpush1.msra.mxu0 %v81
    %1030 = vmatprep.subr.mxu0 0.0
    %1031 = vmatpush1.msra.mxu0 %v82
    %1032 = vmatprep.subr.mxu0 0.0
    %1033 = vmatpush1.msra.mxu0 %v83
    %1034 = vmatprep.subr.mxu0 0.0
    %1035 = vmatpush1.msra.mxu0 0.0
    %1036 = vmatprep.subr.mxu0 0.0
    %1037 = vmatpush1.msra.mxu0 0.0
    %1038 = vmatprep.subr.mxu0 0.0
    %1039 = vmatpush1.msra.mxu0 0.0
    %1040 = vmatprep.subr.mxu0 0.0
    %1041 = vmatpush1.msra.mxu0 0.0
    %1042 = vmatprep.subr.mxu0 0.0
    %1043 = vmatpush1.msra.mxu0 0.0
    %1044 = vmatprep.subr.mxu0 0.0
    %1045 = vmatpush1.msra.mxu0 0.0
    %1046 = vmatprep.subr.mxu0 0.0
    %1047 = vmatpush1.msra.mxu0 0.0
    %1048 = vmatprep.subr.mxu0 0.0
    %1049 = vmatpush1.msra.mxu0 0.0
    %1050 = vmatprep.subr.mxu0 0.0
    %1051 = vmatpush1.msra.mxu0 0.0
    %1052 = vmatprep.subr.mxu0 0.0
    %1053 = vmatpush1.msra.mxu0 0.0
    %1054 = vmatprep.subr.mxu0 0.0
    %1055 = vmatpush1.msra.mxu0 0.0
    %1056 = vmatprep.subr.mxu0 0.0
    %1057 = vmatpush1.msra.mxu0 0.0
    %1058 = vmatprep.subr.mxu0 0.0
    %1059 = vmatpush1.msra.mxu0 0.0
    %1060 = vmatprep.subr.mxu0 0.0
    %1061 = vmatpush1.msra.mxu0 0.0
    %1062 = vmatprep.subr.mxu0 0.0
    %1063 = vmatpush1.msra.mxu0 0.0
    %1064 = vmatprep.subr.mxu0 0.0
    %1065 = vmatpush1.msra.mxu0 0.0
    %1066 = vmatprep.mubr.f32.mxu0 0.0
    %1067 = vmatmul.mubr.f32.gmra.mrb[0].mxu0 %v999
    %v1068 = vpop.f32.mrb[0].mxu0
    %v1069 = vadd.f32 %v89, %v1068
    %v1070 = vpop.f32.mrb[0].mxu0
    %1071 = vdwg.mxu0
    %v1072 = vmul.f32 %v977, 0.9
    %v1073 = vadd.f32 %v1072, %v1069
    %v1074 = vsub.f32 %v1073, 1.0
    %v1075 = vmul.f32 %v1074, 5.0
    %v1076 = vtanh.pop %v1075
    %v1077 = vmul.f32 %v1076, 0.5
    %v1078 = vadd.f32 %v1077, 0.5
    %v1079 = vsub.f32 1.0, %v1078
    %v1080 = vmul.f32 %v1073, %v1079
    %v1082 = vcombine.high %v357, %v357
    %v1084 = vunpack.c.l.s4 1966171168
    %v1085 = vunpack.c.0.s8 %v1084
    %v1086 = vlaneseq
    %v1087 = vshrl.u32 %v1086, 7
    %v1088 = vsub.s32 %v1085, %v1087
    %v1089 = vrot.slane %v357, %v1088
    %v1091 = vunpack.c.l.s4 1966171168
    %v1092 = vunpack.c.0.s8 %v1091
    %v1093 = vlaneseq
    %v1094 = vshrl.u32 %v1093, 7
    %v1095 = vsub.s32 %v1092, %v1094
    %v1096 = vrot.slane %v1082, %v1095
    %v1097 = vcombine.high %v1089, %v1089
    %v1098 = vcombine.high %v1096, %v1096
    %v1100 = vunpack.c.l.s4 1966171168
    %v1101 = vunpack.c.0.s8 %v1100
    %v1102 = vlaneseq
    %v1103 = vshrl.u32 %v1102, 7
    %v1104 = vsub.s32 %v1101, %v1103
    %v1105 = vrot.slane %v1089, %v1104
    %v1107 = vunpack.c.l.s4 1966171168
    %v1108 = vunpack.c.0.s8 %v1107
    %v1109 = vlaneseq
    %v1110 = vshrl.u32 %v1109, 7
    %v1111 = vsub.s32 %v1108, %v1110
    %v1112 = vrot.slane %v1096, %v1111
    %v1114 = vunpack.c.l.s4 1966171168
    %v1115 = vunpack.c.0.s8 %v1114
    %v1116 = vlaneseq
    %v1117 = vshrl.u32 %v1116, 7
    %v1118 = vsub.s32 %v1115, %v1117
    %v1119 = vrot.slane %v1097, %v1118
    %v1121 = vunpack.c.l.s4 1966171168
    %v1122 = vunpack.c.0.s8 %v1121
    %v1123 = vlaneseq
    %v1124 = vshrl.u32 %v1123, 7
    %v1125 = vsub.s32 %v1122, %v1124
    %v1126 = vrot.slane %v1098, %v1125
    %v1127 = vcombine.high %v1105, %v1105
    %v1128 = vcombine.high %v1112, %v1112
    %v1129 = vcombine.high %v1119, %v1119
    %v1130 = vcombine.high %v1126, %v1126
    %v1140 = vcombine.high %v460, %v460
    %v1142 = vunpack.c.l.s4 1966171168
    %v1143 = vunpack.c.0.s8 %v1142
    %v1144 = vlaneseq
    %v1145 = vshrl.u32 %v1144, 7
    %v1146 = vsub.s32 %v1143, %v1145
    %v1147 = vrot.slane %v460, %v1146
    %v1149 = vunpack.c.l.s4 1966171168
    %v1150 = vunpack.c.0.s8 %v1149
    %v1151 = vlaneseq
    %v1152 = vshrl.u32 %v1151, 7
    %v1153 = vsub.s32 %v1150, %v1152
    %v1154 = vrot.slane %v1140, %v1153
    %v1155 = vcombine.high %v1147, %v1147
    %v1156 = vcombine.high %v1154, %v1154
    %v1158 = vunpack.c.l.s4 1966171168
    %v1159 = vunpack.c.0.s8 %v1158
    %v1160 = vlaneseq
    %v1161 = vshrl.u32 %v1160, 7
    %v1162 = vsub.s32 %v1159, %v1161
    %v1163 = vrot.slane %v1147, %v1162
    %v1165 = vunpack.c.l.s4 1966171168
    %v1166 = vunpack.c.0.s8 %v1165
    %v1167 = vlaneseq
    %v1168 = vshrl.u32 %v1167, 7
    %v1169 = vsub.s32 %v1166, %v1168
    %v1170 = vrot.slane %v1154, %v1169
    %v1172 = vunpack.c.l.s4 1966171168
    %v1173 = vunpack.c.0.s8 %v1172
    %v1174 = vlaneseq
    %v1175 = vshrl.u32 %v1174, 7
    %v1176 = vsub.s32 %v1173, %v1175
    %v1177 = vrot.slane %v1155, %v1176
    %v1179 = vunpack.c.l.s4 1966171168
    %v1180 = vunpack.c.0.s8 %v1179
    %v1181 = vlaneseq
    %v1182 = vshrl.u32 %v1181, 7
    %v1183 = vsub.s32 %v1180, %v1182
    %v1184 = vrot.slane %v1156, %v1183
    %v1185 = vcombine.high %v1163, %v1163
    %v1186 = vcombine.high %v1170, %v1170
    %v1187 = vcombine.high %v1177, %v1177
    %v1188 = vcombine.high %v1184, %v1184
    %v1190 = vcombine.high %v563, %v563
    %v1192 = vunpack.c.l.s4 1966171168
    %v1193 = vunpack.c.0.s8 %v1192
    %v1194 = vlaneseq
    %v1195 = vshrl.u32 %v1194, 7
    %v1196 = vsub.s32 %v1193, %v1195
    %v1197 = vrot.slane %v563, %v1196
    %v1199 = vunpack.c.l.s4 1966171168
    %v1200 = vunpack.c.0.s8 %v1199
    %v1201 = vlaneseq
    %v1202 = vshrl.u32 %v1201, 7
    %v1203 = vsub.s32 %v1200, %v1202
    %v1204 = vrot.slane %v1190, %v1203
    %v1205 = vcombine.high %v1197, %v1197
    %v1206 = vcombine.high %v1204, %v1204
    %v1208 = vunpack.c.l.s4 1966171168
    %v1209 = vunpack.c.0.s8 %v1208
    %v1210 = vlaneseq
    %v1211 = vshrl.u32 %v1210, 7
    %v1212 = vsub.s32 %v1209, %v1211
    %v1213 = vrot.slane %v1197, %v1212
    %v1215 = vunpack.c.l.s4 1966171168
    %v1216 = vunpack.c.0.s8 %v1215
    %v1217 = vlaneseq
    %v1218 = vshrl.u32 %v1217, 7
    %v1219 = vsub.s32 %v1216, %v1218
    %v1220 = vrot.slane %v1204, %v1219
    %v1222 = vunpack.c.l.s4 1966171168
    %v1223 = vunpack.c.0.s8 %v1222
    %v1224 = vlaneseq
    %v1225 = vshrl.u32 %v1224, 7
    %v1226 = vsub.s32 %v1223, %v1225
    %v1227 = vrot.slane %v1205, %v1226
    %v1229 = vunpack.c.l.s4 1966171168
    %v1230 = vunpack.c.0.s8 %v1229
    %v1231 = vlaneseq
    %v1232 = vshrl.u32 %v1231, 7
    %v1233 = vsub.s32 %v1230, %v1232
    %v1234 = vrot.slane %v1206, %v1233
    %v1235 = vcombine.high %v1213, %v1213
    %v1236 = vcombine.high %v1220, %v1220
    %v1237 = vcombine.high %v1227, %v1227
    %v1238 = vcombine.high %v1234, %v1234
    %v1240 = vcombine.high %v666, %v666
    %v1242 = vunpack.c.l.s4 1966171168
    %v1243 = vunpack.c.0.s8 %v1242
    %v1244 = vlaneseq
    %v1245 = vshrl.u32 %v1244, 7
    %v1246 = vsub.s32 %v1243, %v1245
    %v1247 = vrot.slane %v666, %v1246
    %v1249 = vunpack.c.l.s4 1966171168
    %v1250 = vunpack.c.0.s8 %v1249
    %v1251 = vlaneseq
    %v1252 = vshrl.u32 %v1251, 7
    %v1253 = vsub.s32 %v1250, %v1252
    %v1254 = vrot.slane %v1240, %v1253
    %v1255 = vcombine.high %v1247, %v1247
    %v1256 = vcombine.high %v1254, %v1254
    %v1258 = vunpack.c.l.s4 1966171168
    %v1259 = vunpack.c.0.s8 %v1258
    %v1260 = vlaneseq
    %v1261 = vshrl.u32 %v1260, 7
    %v1262 = vsub.s32 %v1259, %v1261
    %v1263 = vrot.slane %v1247, %v1262
    %v1265 = vunpack.c.l.s4 1966171168
    %v1266 = vunpack.c.0.s8 %v1265
    %v1267 = vlaneseq
    %v1268 = vshrl.u32 %v1267, 7
    %v1269 = vsub.s32 %v1266, %v1268
    %v1270 = vrot.slane %v1254, %v1269
    %v1272 = vunpack.c.l.s4 1966171168
    %v1273 = vunpack.c.0.s8 %v1272
    %v1274 = vlaneseq
    %v1275 = vshrl.u32 %v1274, 7
    %v1276 = vsub.s32 %v1273, %v1275
    %v1277 = vrot.slane %v1255, %v1276
    %v1279 = vunpack.c.l.s4 1966171168
    %v1280 = vunpack.c.0.s8 %v1279
    %v1281 = vlaneseq
    %v1282 = vshrl.u32 %v1281, 7
    %v1283 = vsub.s32 %v1280, %v1282
    %v1284 = vrot.slane %v1256, %v1283
    %v1285 = vcombine.high %v1263, %v1263
    %v1286 = vcombine.high %v1270, %v1270
    %v1287 = vcombine.high %v1277, %v1277
    %v1288 = vcombine.high %v1284, %v1284
    %v1290 = vcombine.high %v769, %v769
    %v1292 = vunpack.c.l.s4 1966171168
    %v1293 = vunpack.c.0.s8 %v1292
    %v1294 = vlaneseq
    %v1295 = vshrl.u32 %v1294, 7
    %v1296 = vsub.s32 %v1293, %v1295
    %v1297 = vrot.slane %v769, %v1296
    %v1299 = vunpack.c.l.s4 1966171168
    %v1300 = vunpack.c.0.s8 %v1299
    %v1301 = vlaneseq
    %v1302 = vshrl.u32 %v1301, 7
    %v1303 = vsub.s32 %v1300, %v1302
    %v1304 = vrot.slane %v1290, %v1303
    %v1305 = vcombine.high %v1297, %v1297
    %v1306 = vcombine.high %v1304, %v1304
    %v1308 = vunpack.c.l.s4 1966171168
    %v1309 = vunpack.c.0.s8 %v1308
    %v1310 = vlaneseq
    %v1311 = vshrl.u32 %v1310, 7
    %v1312 = vsub.s32 %v1309, %v1311
    %v1313 = vrot.slane %v1297, %v1312
    %v1315 = vunpack.c.l.s4 1966171168
    %v1316 = vunpack.c.0.s8 %v1315
    %v1317 = vlaneseq
    %v1318 = vshrl.u32 %v1317, 7
    %v1319 = vsub.s32 %v1316, %v1318
    %v1320 = vrot.slane %v1304, %v1319
    %v1322 = vunpack.c.l.s4 1966171168
    %v1323 = vunpack.c.0.s8 %v1322
    %v1324 = vlaneseq
    %v1325 = vshrl.u32 %v1324, 7
    %v1326 = vsub.s32 %v1323, %v1325
    %v1327 = vrot.slane %v1305, %v1326
    %v1329 = vunpack.c.l.s4 1966171168
    %v1330 = vunpack.c.0.s8 %v1329
    %v1331 = vlaneseq
    %v1332 = vshrl.u32 %v1331, 7
    %v1333 = vsub.s32 %v1330, %v1332
    %v1334 = vrot.slane %v1306, %v1333
    %v1335 = vcombine.high %v1313, %v1313
    %v1336 = vcombine.high %v1320, %v1320
    %v1337 = vcombine.high %v1327, %v1327
    %v1338 = vcombine.high %v1334, %v1334
    %v1340 = vcombine.high %v872, %v872
    %v1342 = vunpack.c.l.s4 1966171168
    %v1343 = vunpack.c.0.s8 %v1342
    %v1344 = vlaneseq
    %v1345 = vshrl.u32 %v1344, 7
    %v1346 = vsub.s32 %v1343, %v1345
    %v1347 = vrot.slane %v872, %v1346
    %v1349 = vunpack.c.l.s4 1966171168
    %v1350 = vunpack.c.0.s8 %v1349
    %v1351 = vlaneseq
    %v1352 = vshrl.u32 %v1351, 7
    %v1353 = vsub.s32 %v1350, %v1352
    %v1354 = vrot.slane %v1340, %v1353
    %v1355 = vcombine.high %v1347, %v1347
    %v1356 = vcombine.high %v1354, %v1354
    %v1358 = vunpack.c.l.s4 1966171168
    %v1359 = vunpack.c.0.s8 %v1358
    %v1360 = vlaneseq
    %v1361 = vshrl.u32 %v1360, 7
    %v1362 = vsub.s32 %v1359, %v1361
    %v1363 = vrot.slane %v1347, %v1362
    %v1365 = vunpack.c.l.s4 1966171168
    %v1366 = vunpack.c.0.s8 %v1365
    %v1367 = vlaneseq
    %v1368 = vshrl.u32 %v1367, 7
    %v1369 = vsub.s32 %v1366, %v1368
    %v1370 = vrot.slane %v1354, %v1369
    %v1372 = vunpack.c.l.s4 1966171168
    %v1373 = vunpack.c.0.s8 %v1372
    %v1374 = vlaneseq
    %v1375 = vshrl.u32 %v1374, 7
    %v1376 = vsub.s32 %v1373, %v1375
    %v1377 = vrot.slane %v1355, %v1376
    %v1379 = vunpack.c.l.s4 1966171168
    %v1380 = vunpack.c.0.s8 %v1379
    %v1381 = vlaneseq
    %v1382 = vshrl.u32 %v1381, 7
    %v1383 = vsub.s32 %v1380, %v1382
    %v1384 = vrot.slane %v1356, %v1383
    %v1385 = vcombine.high %v1363, %v1363
    %v1386 = vcombine.high %v1370, %v1370
    %v1387 = vcombine.high %v1377, %v1377
    %v1388 = vcombine.high %v1384, %v1384
    %v1390 = vcombine.high %v975, %v975
    %v1392 = vunpack.c.l.s4 1966171168
    %v1393 = vunpack.c.0.s8 %v1392
    %v1394 = vlaneseq
    %v1395 = vshrl.u32 %v1394, 7
    %v1396 = vsub.s32 %v1393, %v1395
    %v1397 = vrot.slane %v975, %v1396
    %v1399 = vunpack.c.l.s4 1966171168
    %v1400 = vunpack.c.0.s8 %v1399
    %v1401 = vlaneseq
    %v1402 = vshrl.u32 %v1401, 7
    %v1403 = vsub.s32 %v1400, %v1402
    %v1404 = vrot.slane %v1390, %v1403
    %v1405 = vcombine.high %v1397, %v1397
    %v1406 = vcombine.high %v1404, %v1404
    %v1408 = vunpack.c.l.s4 1966171168
    %v1409 = vunpack.c.0.s8 %v1408
    %v1410 = vlaneseq
    %v1411 = vshrl.u32 %v1410, 7
    %v1412 = vsub.s32 %v1409, %v1411
    %v1413 = vrot.slane %v1397, %v1412
    %v1415 = vunpack.c.l.s4 1966171168
    %v1416 = vunpack.c.0.s8 %v1415
    %v1417 = vlaneseq
    %v1418 = vshrl.u32 %v1417, 7
    %v1419 = vsub.s32 %v1416, %v1418
    %v1420 = vrot.slane %v1404, %v1419
    %v1422 = vunpack.c.l.s4 1966171168
    %v1423 = vunpack.c.0.s8 %v1422
    %v1424 = vlaneseq
    %v1425 = vshrl.u32 %v1424, 7
    %v1426 = vsub.s32 %v1423, %v1425
    %v1427 = vrot.slane %v1405, %v1426
    %v1429 = vunpack.c.l.s4 1966171168
    %v1430 = vunpack.c.0.s8 %v1429
    %v1431 = vlaneseq
    %v1432 = vshrl.u32 %v1431, 7
    %v1433 = vsub.s32 %v1430, %v1432
    %v1434 = vrot.slane %v1406, %v1433
    %v1435 = vcombine.high %v1413, %v1413
    %v1436 = vcombine.high %v1420, %v1420
    %v1437 = vcombine.high %v1427, %v1427
    %v1438 = vcombine.high %v1434, %v1434
    %v1440 = vcombine.high %v1078, %v1078
    %v1442 = vunpack.c.l.s4 1966171168
    %v1443 = vunpack.c.0.s8 %v1442
    %v1444 = vlaneseq
    %v1445 = vshrl.u32 %v1444, 7
    %v1446 = vsub.s32 %v1443, %v1445
    %v1447 = vrot.slane %v1078, %v1446
    %v1449 = vunpack.c.l.s4 1966171168
    %v1450 = vunpack.c.0.s8 %v1449
    %v1451 = vlaneseq
    %v1452 = vshrl.u32 %v1451, 7
    %v1453 = vsub.s32 %v1450, %v1452
    %v1454 = vrot.slane %v1440, %v1453
    %v1455 = vcombine.high %v1447, %v1447
    %v1456 = vcombine.high %v1454, %v1454
    %v1458 = vunpack.c.l.s4 1966171168
    %v1459 = vunpack.c.0.s8 %v1458
    %v1460 = vlaneseq
    %v1461 = vshrl.u32 %v1460, 7
    %v1462 = vsub.s32 %v1459, %v1461
    %v1463 = vrot.slane %v1447, %v1462
    %v1465 = vunpack.c.l.s4 1966171168
    %v1466 = vunpack.c.0.s8 %v1465
    %v1467 = vlaneseq
    %v1468 = vshrl.u32 %v1467, 7
    %v1469 = vsub.s32 %v1466, %v1468
    %v1470 = vrot.slane %v1454, %v1469
    %v1472 = vunpack.c.l.s4 1966171168
    %v1473 = vunpack.c.0.s8 %v1472
    %v1474 = vlaneseq
    %v1475 = vshrl.u32 %v1474, 7
    %v1476 = vsub.s32 %v1473, %v1475
    %v1477 = vrot.slane %v1455, %v1476
    %v1479 = vunpack.c.l.s4 1966171168
    %v1480 = vunpack.c.0.s8 %v1479
    %v1481 = vlaneseq
    %v1482 = vshrl.u32 %v1481, 7
    %v1483 = vsub.s32 %v1480, %v1482
    %v1484 = vrot.slane %v1456, %v1483
    %v1485 = vcombine.high %v1463, %v1463
    %v1486 = vcombine.high %v1470, %v1470
    %v1487 = vcombine.high %v1477, %v1477
    %v1488 = vcombine.high %v1484, %v1484
    %v1489 = vlaneseq
    %v1490 = vshrl.u32 %v1489, 7
    %v1491 = vsub.s32 0, %v1490
    %v1492 = vrot.slane %v1163, %v1491
    %v1493 = vlaneseq
    %v1494 = vshrl.u32 %v1493, 7
    %v1495 = vsub.s32 0, %v1494
    %v1496 = vrot.slane %v1177, %v1495
    %v1497 = vlaneseq
    %v1498 = vshrl.u32 %v1497, 7
    %v1499 = vsub.s32 0, %v1498
    %v1500 = vrot.slane %v1185, %v1499
    %v1501 = vlaneseq
    %v1502 = vshrl.u32 %v1501, 7
    %v1503 = vsub.s32 0, %v1502
    %v1504 = vrot.slane %v1187, %v1503
    %v1505 = vlaneseq
    %v1506 = vshrl.u32 %v1505, 7
    %v1507 = vsub.s32 0, %v1506
    %v1508 = vrot.slane %v1170, %v1507
    %v1509 = vlaneseq
    %v1510 = vshrl.u32 %v1509, 7
    %v1511 = vsub.s32 0, %v1510
    %v1512 = vrot.slane %v1184, %v1511
    %v1513 = vlaneseq
    %v1514 = vshrl.u32 %v1513, 7
    %v1515 = vsub.s32 0, %v1514
    %v1516 = vrot.slane %v1186, %v1515
    %v1517 = vlaneseq
    %v1518 = vshrl.u32 %v1517, 7
    %v1519 = vsub.s32 0, %v1518
    %v1520 = vrot.slane %v1188, %v1519
    %v1529 = vlaneseq
    %v1530 = vshrl.u32 %v1529, 7
    %v1531 = vsub.s32 0, %v1530
    %v1532 = vrot.slane %v1213, %v1531
    %v1533 = vlaneseq
    %v1534 = vshrl.u32 %v1533, 7
    %v1535 = vsub.s32 0, %v1534
    %v1536 = vrot.slane %v1227, %v1535
    %v1537 = vlaneseq
    %v1538 = vshrl.u32 %v1537, 7
    %v1539 = vsub.s32 0, %v1538
    %v1540 = vrot.slane %v1235, %v1539
    %v1541 = vlaneseq
    %v1542 = vshrl.u32 %v1541, 7
    %v1543 = vsub.s32 0, %v1542
    %v1544 = vrot.slane %v1237, %v1543
    %v1545 = vlaneseq
    %v1546 = vshrl.u32 %v1545, 7
    %v1547 = vsub.s32 0, %v1546
    %v1548 = vrot.slane %v1220, %v1547
    %v1549 = vlaneseq
    %v1550 = vshrl.u32 %v1549, 7
    %v1551 = vsub.s32 0, %v1550
    %v1552 = vrot.slane %v1234, %v1551
    %v1553 = vlaneseq
    %v1554 = vshrl.u32 %v1553, 7
    %v1555 = vsub.s32 0, %v1554
    %v1556 = vrot.slane %v1236, %v1555
    %v1557 = vlaneseq
    %v1558 = vshrl.u32 %v1557, 7
    %v1559 = vsub.s32 0, %v1558
    %v1560 = vrot.slane %v1238, %v1559
    %v1569 = vlaneseq
    %v1570 = vshrl.u32 %v1569, 7
    %v1571 = vsub.s32 0, %v1570
    %v1572 = vrot.slane %v1263, %v1571
    %v1573 = vlaneseq
    %v1574 = vshrl.u32 %v1573, 7
    %v1575 = vsub.s32 0, %v1574
    %v1576 = vrot.slane %v1277, %v1575
    %v1577 = vlaneseq
    %v1578 = vshrl.u32 %v1577, 7
    %v1579 = vsub.s32 0, %v1578
    %v1580 = vrot.slane %v1285, %v1579
    %v1581 = vlaneseq
    %v1582 = vshrl.u32 %v1581, 7
    %v1583 = vsub.s32 0, %v1582
    %v1584 = vrot.slane %v1287, %v1583
    %v1585 = vlaneseq
    %v1586 = vshrl.u32 %v1585, 7
    %v1587 = vsub.s32 0, %v1586
    %v1588 = vrot.slane %v1270, %v1587
    %v1589 = vlaneseq
    %v1590 = vshrl.u32 %v1589, 7
    %v1591 = vsub.s32 0, %v1590
    %v1592 = vrot.slane %v1284, %v1591
    %v1593 = vlaneseq
    %v1594 = vshrl.u32 %v1593, 7
    %v1595 = vsub.s32 0, %v1594
    %v1596 = vrot.slane %v1286, %v1595
    %v1597 = vlaneseq
    %v1598 = vshrl.u32 %v1597, 7
    %v1599 = vsub.s32 0, %v1598
    %v1600 = vrot.slane %v1288, %v1599
    %v1609 = vlaneseq
    %v1610 = vshrl.u32 %v1609, 7
    %v1611 = vsub.s32 0, %v1610
    %v1612 = vrot.slane %v1313, %v1611
    %v1613 = vlaneseq
    %v1614 = vshrl.u32 %v1613, 7
    %v1615 = vsub.s32 0, %v1614
    %v1616 = vrot.slane %v1327, %v1615
    %v1617 = vlaneseq
    %v1618 = vshrl.u32 %v1617, 7
    %v1619 = vsub.s32 0, %v1618
    %v1620 = vrot.slane %v1335, %v1619
    %v1621 = vlaneseq
    %v1622 = vshrl.u32 %v1621, 7
    %v1623 = vsub.s32 0, %v1622
    %v1624 = vrot.slane %v1337, %v1623
    %v1625 = vlaneseq
    %v1626 = vshrl.u32 %v1625, 7
    %v1627 = vsub.s32 0, %v1626
    %v1628 = vrot.slane %v1320, %v1627
    %v1629 = vlaneseq
    %v1630 = vshrl.u32 %v1629, 7
    %v1631 = vsub.s32 0, %v1630
    %v1632 = vrot.slane %v1334, %v1631
    %v1633 = vlaneseq
    %v1634 = vshrl.u32 %v1633, 7
    %v1635 = vsub.s32 0, %v1634
    %v1636 = vrot.slane %v1336, %v1635
    %v1637 = vlaneseq
    %v1638 = vshrl.u32 %v1637, 7
    %v1639 = vsub.s32 0, %v1638
    %v1640 = vrot.slane %v1338, %v1639
    %v1649 = vlaneseq
    %v1650 = vshrl.u32 %v1649, 7
    %v1651 = vsub.s32 0, %v1650
    %v1652 = vrot.slane %v1363, %v1651
    %v1653 = vlaneseq
    %v1654 = vshrl.u32 %v1653, 7
    %v1655 = vsub.s32 0, %v1654
    %v1656 = vrot.slane %v1377, %v1655
    %v1657 = vlaneseq
    %v1658 = vshrl.u32 %v1657, 7
    %v1659 = vsub.s32 0, %v1658
    %v1660 = vrot.slane %v1385, %v1659
    %v1661 = vlaneseq
    %v1662 = vshrl.u32 %v1661, 7
    %v1663 = vsub.s32 0, %v1662
    %v1664 = vrot.slane %v1387, %v1663
    %v1665 = vlaneseq
    %v1666 = vshrl.u32 %v1665, 7
    %v1667 = vsub.s32 0, %v1666
    %v1668 = vrot.slane %v1370, %v1667
    %v1669 = vlaneseq
    %v1670 = vshrl.u32 %v1669, 7
    %v1671 = vsub.s32 0, %v1670
    %v1672 = vrot.slane %v1384, %v1671
    %v1673 = vlaneseq
    %v1674 = vshrl.u32 %v1673, 7
    %v1675 = vsub.s32 0, %v1674
    %v1676 = vrot.slane %v1386, %v1675
    %v1677 = vlaneseq
    %v1678 = vshrl.u32 %v1677, 7
    %v1679 = vsub.s32 0, %v1678
    %v1680 = vrot.slane %v1388, %v1679
    %v1689 = vlaneseq
    %v1690 = vshrl.u32 %v1689, 7
    %v1691 = vsub.s32 0, %v1690
    %v1692 = vrot.slane %v1413, %v1691
    %v1693 = vlaneseq
    %v1694 = vshrl.u32 %v1693, 7
    %v1695 = vsub.s32 0, %v1694
    %v1696 = vrot.slane %v1427, %v1695
    %v1697 = vlaneseq
    %v1698 = vshrl.u32 %v1697, 7
    %v1699 = vsub.s32 0, %v1698
    %v1700 = vrot.slane %v1435, %v1699
    %v1701 = vlaneseq
    %v1702 = vshrl.u32 %v1701, 7
    %v1703 = vsub.s32 0, %v1702
    %v1704 = vrot.slane %v1437, %v1703
    %v1705 = vlaneseq
    %v1706 = vshrl.u32 %v1705, 7
    %v1707 = vsub.s32 0, %v1706
    %v1708 = vrot.slane %v1420, %v1707
    %v1709 = vlaneseq
    %v1710 = vshrl.u32 %v1709, 7
    %v1711 = vsub.s32 0, %v1710
    %v1712 = vrot.slane %v1434, %v1711
    %v1713 = vlaneseq
    %v1714 = vshrl.u32 %v1713, 7
    %v1715 = vsub.s32 0, %v1714
    %v1716 = vrot.slane %v1436, %v1715
    %v1717 = vlaneseq
    %v1718 = vshrl.u32 %v1717, 7
    %v1719 = vsub.s32 0, %v1718
    %v1720 = vrot.slane %v1438, %v1719
    %v1729 = vlaneseq
    %v1730 = vshrl.u32 %v1729, 7
    %v1731 = vsub.s32 0, %v1730
    %v1732 = vrot.slane %v1463, %v1731
    %v1733 = vlaneseq
    %v1734 = vshrl.u32 %v1733, 7
    %v1735 = vsub.s32 0, %v1734
    %v1736 = vrot.slane %v1477, %v1735
    %v1737 = vlaneseq
    %v1738 = vshrl.u32 %v1737, 7
    %v1739 = vsub.s32 0, %v1738
    %v1740 = vrot.slane %v1485, %v1739
    %v1741 = vlaneseq
    %v1742 = vshrl.u32 %v1741, 7
    %v1743 = vsub.s32 0, %v1742
    %v1744 = vrot.slane %v1487, %v1743
    %v1745 = vlaneseq
    %v1746 = vshrl.u32 %v1745, 7
    %v1747 = vsub.s32 0, %v1746
    %v1748 = vrot.slane %v1470, %v1747
    %v1749 = vlaneseq
    %v1750 = vshrl.u32 %v1749, 7
    %v1751 = vsub.s32 0, %v1750
    %v1752 = vrot.slane %v1484, %v1751
    %v1753 = vlaneseq
    %v1754 = vshrl.u32 %v1753, 7
    %v1755 = vsub.s32 0, %v1754
    %v1756 = vrot.slane %v1486, %v1755
    %v1757 = vlaneseq
    %v1758 = vshrl.u32 %v1757, 7
    %v1759 = vsub.s32 0, %v1758
    %v1760 = vrot.slane %v1488, %v1759
    %vm1769 = vcmask 1040384
    %v1770 = vsel %vm1769, %v1105, %v1492
    %v1771 = vsel %vm1769, %v1119, %v1496
    %v1772 = vsel %vm1769, %v1127, %v1500
    %v1773 = vsel %vm1769, %v1129, %v1504
    %v1774 = vsel %vm1769, %v1112, %v1508
    %v1775 = vsel %vm1769, %v1126, %v1512
    %v1776 = vsel %vm1769, %v1128, %v1516
    %v1777 = vsel %vm1769, %v1130, %v1520
    %vm1778 = vcmask 1041408
    %v1779 = vsel %vm1778, %v1770, %v1532
    %v1780 = vsel %vm1778, %v1771, %v1536
    %v1781 = vsel %vm1778, %v1772, %v1540
    %v1782 = vsel %vm1778, %v1773, %v1544
    %v1783 = vsel %vm1778, %v1774, %v1548
    %v1784 = vsel %vm1778, %v1775, %v1552
    %v1785 = vsel %vm1778, %v1776, %v1556
    %v1786 = vsel %vm1778, %v1777, %v1560
    %vm1787 = vcmask 1042432
    %v1788 = vsel %vm1787, %v1779, %v1572
    %v1789 = vsel %vm1787, %v1780, %v1576
    %v1790 = vsel %vm1787, %v1781, %v1580
    %v1791 = vsel %vm1787, %v1782, %v1584
    %v1792 = vsel %vm1787, %v1783, %v1588
    %v1793 = vsel %vm1787, %v1784, %v1592
    %v1794 = vsel %vm1787, %v1785, %v1596
    %v1795 = vsel %vm1787, %v1786, %v1600
    %vm1796 = vcmask 1043456
    %v1797 = vsel %vm1796, %v1788, %v1612
    %v1798 = vsel %vm1796, %v1789, %v1616
    %v1799 = vsel %vm1796, %v1790, %v1620
    %v1800 = vsel %vm1796, %v1791, %v1624
    %v1801 = vsel %vm1796, %v1792, %v1628
    %v1802 = vsel %vm1796, %v1793, %v1632
    %v1803 = vsel %vm1796, %v1794, %v1636
    %v1804 = vsel %vm1796, %v1795, %v1640
    %vm1805 = vcmask 1044480
    %v1806 = vsel %vm1805, %v1797, %v1652
    %v1807 = vsel %vm1805, %v1798, %v1656
    %v1808 = vsel %vm1805, %v1799, %v1660
    %v1809 = vsel %vm1805, %v1800, %v1664
    %v1810 = vsel %vm1805, %v1801, %v1668
    %v1811 = vsel %vm1805, %v1802, %v1672
    %v1812 = vsel %vm1805, %v1803, %v1676
    %v1813 = vsel %vm1805, %v1804, %v1680
    %vm1814 = vcmask 1045504
    %v1815 = vsel %vm1814, %v1806, %v1692
    %v1816 = vsel %vm1814, %v1807, %v1696
    %v1817 = vsel %vm1814, %v1808, %v1700
    %v1818 = vsel %vm1814, %v1809, %v1704
    %v1819 = vsel %vm1814, %v1810, %v1708
    %v1820 = vsel %vm1814, %v1811, %v1712
    %v1821 = vsel %vm1814, %v1812, %v1716
    %v1822 = vsel %vm1814, %v1813, %v1720
    %vm1823 = vcmask 1046528
    %v1824 = vsel %vm1823, %v1815, %v1732
    %v1825 = vsel %vm1823, %v1816, %v1736
    %v1826 = vsel %vm1823, %v1817, %v1740
    %v1827 = vsel %vm1823, %v1818, %v1744
    %v1828 = vsel %vm1823, %v1819, %v1748
    %v1829 = vsel %vm1823, %v1820, %v1752
    %v1830 = vsel %vm1823, %v1821, %v1756
    %v1831 = vsel %vm1823, %v1822, %v1760
    %1832 = vst [vmem:[#allocation10] sm:$0xff] %v1824
    %1833 = vst [vmem:[#allocation10 + $0x8] sm:$0xff] %v1825
    %1834 = vst [vmem:[#allocation10 + $0x10] sm:$0xff] %v1826
    %1835 = vst [vmem:[#allocation10 + $0x18] sm:$0xff] %v1827
    %1836 = vst [vmem:[#allocation10 + $0x20] sm:$0xff] %v1828
    %1837 = vst [vmem:[#allocation10 + $0x28] sm:$0xff] %v1829
    %1838 = vst [vmem:[#allocation10 + $0x30] sm:$0xff] %v1830
    %1839 = vst [vmem:[#allocation10 + $0x38] sm:$0xff] %v1831
    %1840 = vst [vmem:[#allocation2] sm:$0xff] %v1001
    %1841 = vst [vmem:[#allocation3] sm:$0xff] %v1080
    // Predicated region
    $region38: #{tpu_custom_call.1} parent=1 // pred_check
      _
    $region39: #{tpu_custom_call.1} parent=1 // pred_check_branch
      %1843 = sbr.rel (0) target = $region41
    $region40: #{tpu_custom_call.1} parent=1 // pred_region
      %s1845 = ssub.s32 1024, 1024
      %1846 = vsyncadd [#allocation6], %s1845
      %s1847 = sshll.u32 [#allocation10], 4
      %s1848 = int_to_ptr.vmem [resolvable:$true] %s1847
      %1853 = dma.vmem_to_hbm [thread:$0]  %s1848, 1024, %s5, [#allocation6], 128, 128, 8
    $region41: #{tpu_custom_call.1} parent=1 // pred_fallthru
      _
    // Predicated region
    $region42: #{tpu_custom_call.1} parent=1 // pred_check
      _
    $region43: #{tpu_custom_call.1} parent=1 // pred_check_branch
      %1855 = sbr.rel (0) target = $region45
    $region44: #{tpu_custom_call.1} parent=1 // pred_region
      %1856 = dma.done [#allocation6], 1024
    $region45: #{tpu_custom_call.1} parent=1 // pred_fallthru
      _
    %1857 = vsyncpa [#allocation5], 1
    %1858 = vsyncpa [#allocation8], 1
    %1859 = vsyncpa [#allocation6], 1

</llo_original>
